<compile_context>
chip_gen: v7x
topology: tpu7x:2x2x1
jax: 0.10.0
libtpu: 0.0.40
codegen_flags: <defaults>
</compile_context>

<pallas_src>
import jax
import jax.numpy as jnp
from jax.experimental import pallas as pl
from jax.experimental.pallas import tpu as pltpu


def s_lstm_kernel(x_ref, s_ref, srep_ref, h0_ref, c0_ref,
                  Wa_ref, Wb_ref, Ub_ref, Ua_ref, Wc_ref, Uc_ref, b_ref,
                  h_out_ref, wc_ref):
    B, H = h0_ref.shape
    TB = x_ref.shape[0]
    T = TB // B
    f32, bf16 = jnp.float32, jnp.bfloat16

    # ---- one-time precompute, off the serial chain (M = T*B rows) ----------
    # t2 is computed from the pre-tiled s so no in-kernel reshape/broadcast is
    # needed; t5 stays at (B, 4*RH) because it multiplies the per-step t6.
    t2_rep = jnp.dot(srep_ref[...], Wb_ref[...],
                     preferred_element_type=f32)                   # (T*B, 4*RH)
    t5 = jnp.dot(s_ref[...], Ub_ref[...],
                 preferred_element_type=f32)                       # (B, 4*RH)
    t1 = jnp.dot(x_ref[...], Wa_ref[...],
                 preferred_element_type=f32)                       # (T*B, 4*RH)
    # Wc-branch contribution for every timestep + bias fold, lane-dense.
    wc_ref[...] = (jnp.dot((t1 * t2_rep).astype(bf16), Wc_ref[...],
                           preferred_element_type=f32)
                   + b_ref[...])                                   # (T*B, 4*H)

    # ---- serial recurrence: only the h-dependent branch remains ------------
    def step(t, carry):
        h, c = carry                                               # f32 (B, H)
        row = pl.multiple_of(t * B, B)

        t6 = jnp.dot(h.astype(bf16), Ua_ref[...],
                     preferred_element_type=f32)                   # (B, 4*RH)
        pre = (wc_ref[pl.ds(row, B), :]
               + jnp.dot((t5 * t6).astype(bf16), Uc_ref[...],
                         preferred_element_type=f32))              # (B, 4*H)

        # Gate order matches the parameter stacking: (i, f, o, c).
        i_g = jax.nn.sigmoid(pre[:, 0 * H:1 * H])
        f_g = jax.nn.sigmoid(pre[:, 1 * H:2 * H])
        o_g = jax.nn.sigmoid(pre[:, 2 * H:3 * H])
        c_g = jnp.tanh(pre[:, 3 * H:4 * H])

        c_new = f_g * c + i_g * c_g                                # f32 cell update
        h_new = o_g * jnp.tanh(c_new)

        h_out_ref[pl.ds(row, B), :] = h_new                        # (B, H) store
        return h_new, c_new

    jax.lax.fori_loop(0, T, step, (h0_ref[...], c0_ref[...]), unroll=True)


def _fuse_params(params):
    """Pre-reshape per-gate weight stacks into lane-dense fused layouts (once)."""
    bf16 = jnp.bfloat16

    def fuse_cols(W):  # (4, In, R) -> (In, 4*R); lane block g == gate g
        G, I, R = W.shape
        return jnp.transpose(W, (1, 0, 2)).reshape(I, G * R)

    Wc_bd = jax.scipy.linalg.block_diag(*[params["Wc"][g] for g in range(4)])
    Uc_bd = jax.scipy.linalg.block_diag(*[params["Uc"][g] for g in range(4)])
    b_all = jnp.transpose(params["b"], (1, 0, 2)).reshape(1, -1)

    return dict(
        Wa=fuse_cols(params["Wa"]).astype(bf16),     # (E, 4*RH)
        Wb=fuse_cols(params["Wb"]).astype(bf16),     # (NT, 4*RH)
        Ub=fuse_cols(params["Ub"]).astype(bf16),     # (NT, 4*RH)
        Ua=fuse_cols(params["Ua"]).astype(bf16),     # (H, 4*RH)
        Wc=Wc_bd.astype(bf16),                       # (4*RH, 4*H) block-diag
        Uc=Uc_bd.astype(bf16),                       # (4*RH, 4*H) block-diag
        b=b_all.astype(jnp.float32),                 # (1, 4*H)
    )


def s_lstm_decode(x_seq, s, h0, c0, params):
    T, B, E = x_seq.shape
    H = h0.shape[1]
    V = params["Wout"].shape[1]
    fp = _fuse_params(params)

    # One-time casts / tiling in the wrapper (review: no per-step converts).
    x_flat = x_seq.reshape(T * B, E).astype(jnp.bfloat16)   # (T*B, E)
    s_bf = s.astype(jnp.bfloat16)                           # (B, NT)
    s_rep = jnp.tile(s_bf, (T, 1))                          # (T*B, NT)

    # Single invocation, no grid: every operand fits comfortably in VMEM on
    # v5e/v6e/v7x (total working set << 1 MiB); full arrays are mapped whole
    # into VMEM (default specs) and the recurrence is unrolled in-kernel.
    h_seq = pl.pallas_call(
        s_lstm_kernel,
        out_shape=jax.ShapeDtypeStruct((T * B, H), jnp.float32),
        scratch_shapes=[pltpu.VMEM((T * B, 4 * H), jnp.float32)],
    )(x_flat, s_bf, s_rep, h0, c0,
      fp["Wa"], fp["Wb"], fp["Ub"], fp["Ua"], fp["Wc"], fp["Uc"], fp["b"])

    # Deferred vocab projection: one (T*B,H)@(H,V) XLA GEMM at M=T*B, f32.
    # Keeps V out of the kernel VMEM footprint (v7x) and off the serial chain.
    logits = (h_seq @ params["Wout"] + params["bout"]).reshape(T, B, V)
    return jnp.transpose(logits, (1, 0, 2))                 # (B, T, V) == torch.cat(dim=1)


def ref_decode(x_seq, s, h0, c0, p):
    """Pure-JAX f32 reference mirroring S_LSTMCell.step / precompute_mats."""
    t2 = jnp.einsum("bn,gnr->gbr", s, p["Wb"])
    t5 = jnp.einsum("bn,gnr->gbr", s, p["Ub"])
    h, c = h0, c0
    outs = []
    for t in range(x_seq.shape[0]):
        x = x_seq[t]
        t1 = jnp.einsum("be,ger->gbr", x, p["Wa"])
        t6 = jnp.einsum("bh,ghr->gbr", h, p["Ua"])
        pre = (jnp.einsum("gbr,grh->gbh", t1 * t2, p["Wc"])
               + jnp.einsum("gbr,grh->gbh", t5 * t6, p["Uc"])
               + p["b"])
        i = jax.nn.sigmoid(pre[0]); f = jax.nn.sigmoid(pre[1])
        o = jax.nn.sigmoid(pre[2]); ct = jnp.tanh(pre[3])
        c = f * c + i * ct
        h = o * jnp.tanh(c)
        outs.append(h @ p["Wout"] + p["bout"][0])
    return jnp.transpose(jnp.stack(outs), (1, 0, 2))


if __name__ == "__main__":
    # Small shapes consistent with the module's forward.
    B = 8            # batch
    T = 8            # out_seq_length
    E = 32           # embedding_size == rnn_in_size
    H = 32           # hidden_size
    RH = 32          # rnn_hidden_size
    NT = 16          # n_tags
    V = 128          # vocab size (len(vocab))

    key = jax.random.PRNGKey(0)
    ks = jax.random.split(key, 16)

    def w(k, shape, scale=0.1):
        return (scale * jax.random.normal(k, shape)).astype(jnp.float32)

    params = {
        "Wa":   w(ks[0], (4, E, RH)),
        "Wb":   w(ks[1], (4, NT, RH)),
        "Ub":   w(ks[2], (4, NT, RH)),
        "Ua":   w(ks[3], (4, H, RH)),
        "Wc":   w(ks[4], (4, RH, H)),
        "Uc":   w(ks[5], (4, RH, H)),
        "b":    jnp.zeros((4, 1, H), jnp.float32),         # b_i/b_f/b_o/b_c init zeros
        "Wout": w(ks[6], (H, V)),                          # nn.Linear weight, pre-transposed
        "bout": jnp.zeros((1, V), jnp.float32),
    }

    # Embedding table + captions (full teacher forcing).
    emb_table = w(ks[7], (V, E), scale=0.5)
    captions = jax.random.randint(ks[8], (B, T), 0, V, dtype=jnp.int32)

    # decoder inputs: step 0 is zeros, step t uses embedding of captions[:, t-1].
    x_seq = jnp.concatenate(
        [jnp.zeros((1, B, E), jnp.float32),
         jnp.transpose(jnp.take(emb_table, captions[:, :T - 1], axis=0), (1, 0, 2))],
        axis=0)                                            # (T, B, E)

    # encoder tags and initial hidden/cell state (dropout = identity in eval).
    s = w(ks[9], (B, NT), scale=1.0)
    h0 = w(ks[10], (B, H), scale=0.5)
    c0 = w(ks[11], (B, H), scale=0.5)

    out = jax.block_until_ready(s_lstm_decode(x_seq, s, h0, c0, params))
    ref = jax.block_until_ready(ref_decode(x_seq, s, h0, c0, params))

    assert out.shape == (B, T, V), out.shape
    # Tolerance loosened vs the f32 reference because MXU operands are bf16
    # (f32 accumulation).  Re-validate at production T/H before shipping.
    assert jnp.allclose(out, ref, atol=3e-2, rtol=3e-2), float(jnp.max(jnp.abs(out - ref)))
    print("KERNEL_OK")
</pallas_src>

<mosaic_0001>
module attributes {stable_mosaic.version = 11 : i64} {
  func.func @s_lstm_kernel(%arg0: memref<64x32xbf16, #tpu.memory_space<vmem>>, %arg1: memref<8x16xbf16, #tpu.memory_space<vmem>>, %arg2: memref<64x16xbf16, #tpu.memory_space<vmem>>, %arg3: memref<8x32xf32, #tpu.memory_space<vmem>>, %arg4: memref<8x32xf32, #tpu.memory_space<vmem>>, %arg5: memref<32x128xbf16, #tpu.memory_space<vmem>>, %arg6: memref<16x128xbf16, #tpu.memory_space<vmem>>, %arg7: memref<16x128xbf16, #tpu.memory_space<vmem>>, %arg8: memref<32x128xbf16, #tpu.memory_space<vmem>>, %arg9: memref<128x128xbf16, #tpu.memory_space<vmem>>, %arg10: memref<128x128xbf16, #tpu.memory_space<vmem>>, %arg11: memref<1x128xf32, #tpu.memory_space<vmem>>, %arg12: memref<64x32xf32, #tpu.memory_space<vmem>>, %arg13: memref<64x128xf32, #tpu.memory_space<vmem>>) attributes {dimension_semantics = [], scalar_prefetch = 0 : i64, scratch_operands = 1 : i64, tpu.core_type = #tpu.core_type<tc>} {
    %c0 = arith.constant 0 : index
    %c0_0 = arith.constant 0 : index
    %0 = vector.load %arg2[%c0, %c0_0] : memref<64x16xbf16, #tpu.memory_space<vmem>>, vector<64x16xbf16>
    %c0_1 = arith.constant 0 : index
    %c0_2 = arith.constant 0 : index
    %1 = vector.load %arg6[%c0_1, %c0_2] : memref<16x128xbf16, #tpu.memory_space<vmem>>, vector<16x128xbf16>
    %cst = arith.constant dense<0.000000e+00> : vector<64x128xf32>
    %2 = tpu.matmul %0, %1, %cst {dimension_numbers = #tpu.dot_dimension_numbers<[1], [0], [0], [1], [0, 0, 1, 1], [], []>} : vector<64x16xbf16>, vector<16x128xbf16>, vector<64x128xf32> -> vector<64x128xf32>
    %c0_3 = arith.constant 0 : index
    %c0_4 = arith.constant 0 : index
    %3 = vector.load %arg1[%c0_3, %c0_4] : memref<8x16xbf16, #tpu.memory_space<vmem>>, vector<8x16xbf16>
    %c0_5 = arith.constant 0 : index
    %c0_6 = arith.constant 0 : index
    %4 = vector.load %arg7[%c0_5, %c0_6] : memref<16x128xbf16, #tpu.memory_space<vmem>>, vector<16x128xbf16>
    %cst_7 = arith.constant dense<0.000000e+00> : vector<8x128xf32>
    %5 = tpu.matmul %3, %4, %cst_7 {dimension_numbers = #tpu.dot_dimension_numbers<[1], [0], [0], [1], [0, 0, 1, 1], [], []>} : vector<8x16xbf16>, vector<16x128xbf16>, vector<8x128xf32> -> vector<8x128xf32>
    %c0_8 = arith.constant 0 : index
    %c0_9 = arith.constant 0 : index
    %6 = vector.load %arg0[%c0_8, %c0_9] : memref<64x32xbf16, #tpu.memory_space<vmem>>, vector<64x32xbf16>
    %c0_10 = arith.constant 0 : index
    %c0_11 = arith.constant 0 : index
    %7 = vector.load %arg5[%c0_10, %c0_11] : memref<32x128xbf16, #tpu.memory_space<vmem>>, vector<32x128xbf16>
    %cst_12 = arith.constant dense<0.000000e+00> : vector<64x128xf32>
    %8 = tpu.matmul %6, %7, %cst_12 {dimension_numbers = #tpu.dot_dimension_numbers<[1], [0], [0], [1], [0, 0, 1, 1], [], []>} : vector<64x32xbf16>, vector<32x128xbf16>, vector<64x128xf32> -> vector<64x128xf32>
    %9 = arith.mulf %8, %2 : vector<64x128xf32>
    %10 = arith.truncf %9 : vector<64x128xf32> to vector<64x128xbf16>
    %c0_13 = arith.constant 0 : index
    %c0_14 = arith.constant 0 : index
    %11 = vector.load %arg9[%c0_13, %c0_14] : memref<128x128xbf16, #tpu.memory_space<vmem>>, vector<128x128xbf16>
    %cst_15 = arith.constant dense<0.000000e+00> : vector<64x128xf32>
    %12 = tpu.matmul %10, %11, %cst_15 {dimension_numbers = #tpu.dot_dimension_numbers<[1], [0], [0], [1], [0, 0, 1, 1], [], []>} : vector<64x128xbf16>, vector<128x128xbf16>, vector<64x128xf32> -> vector<64x128xf32>
    %c0_16 = arith.constant 0 : index
    %c0_17 = arith.constant 0 : index
    %13 = vector.load %arg11[%c0_16, %c0_17] : memref<1x128xf32, #tpu.memory_space<vmem>>, vector<1x128xf32>
    %14 = vector.broadcast %13 : vector<1x128xf32> to vector<64x128xf32>
    %15 = arith.addf %12, %14 : vector<64x128xf32>
    %c0_18 = arith.constant 0 : index
    %c0_19 = arith.constant 0 : index
    %16 = vector.load %arg13[%c0_18, %c0_19] : memref<64x128xf32, #tpu.memory_space<vmem>>, vector<64x128xf32>
    tpu.vector_store %arg13[%c0_18, %c0_19], %15 {strides = array<i32>} : memref<64x128xf32, #tpu.memory_space<vmem>>, vector<64x128xf32>,
    %c0_20 = arith.constant 0 : index
    %c0_21 = arith.constant 0 : index
    %17 = vector.load %arg3[%c0_20, %c0_21] : memref<8x32xf32, #tpu.memory_space<vmem>>, vector<8x32xf32>
    %c0_22 = arith.constant 0 : index
    %c0_23 = arith.constant 0 : index
    %18 = vector.load %arg4[%c0_22, %c0_23] : memref<8x32xf32, #tpu.memory_space<vmem>>, vector<8x32xf32>
    %c0_i32 = arith.constant 0 : i32
    %c8_i32 = arith.constant 8 : i32
    %19 = arith.muli %c0_i32, %c8_i32 : i32
    %20 = tpu.assume_multiple %19, 8 : i32
    %21 = arith.truncf %17 : vector<8x32xf32> to vector<8x32xbf16>
    %c0_24 = arith.constant 0 : index
    %c0_25 = arith.constant 0 : index
    %22 = vector.load %arg8[%c0_24, %c0_25] : memref<32x128xbf16, #tpu.memory_space<vmem>>, vector<32x128xbf16>
    %cst_26 = arith.constant dense<0.000000e+00> : vector<8x128xf32>
    %23 = tpu.matmul %21, %22, %cst_26 {dimension_numbers = #tpu.dot_dimension_numbers<[1], [0], [0], [1], [0, 0, 1, 1], [], []>} : vector<8x32xbf16>, vector<32x128xbf16>, vector<8x128xf32> -> vector<8x128xf32>
    %24 = arith.index_cast %20 : i32 to index
    %c0_27 = arith.constant 0 : index
    %25 = vector.load %arg13[%24, %c0_27] : memref<64x128xf32, #tpu.memory_space<vmem>>, vector<8x128xf32>
    %26 = arith.mulf %5, %23 : vector<8x128xf32>
    %27 = arith.truncf %26 : vector<8x128xf32> to vector<8x128xbf16>
    %c0_28 = arith.constant 0 : index
    %c0_29 = arith.constant 0 : index
    %28 = vector.load %arg10[%c0_28, %c0_29] : memref<128x128xbf16, #tpu.memory_space<vmem>>, vector<128x128xbf16>
    %cst_30 = arith.constant dense<0.000000e+00> : vector<8x128xf32>
    %29 = tpu.matmul %27, %28, %cst_30 {dimension_numbers = #tpu.dot_dimension_numbers<[1], [0], [0], [1], [0, 0, 1, 1], [], []>} : vector<8x128xbf16>, vector<128x128xbf16>, vector<8x128xf32> -> vector<8x128xf32>
    %30 = arith.addf %25, %29 : vector<8x128xf32>
    %31 = vector.extract_strided_slice %30 {offsets = [0, 0], sizes = [8, 32], strides = [1, 1]} : vector<8x128xf32> to vector<8x32xf32>
    %32 = arith.negf %31 : vector<8x32xf32>
    %33 = math.exp %32 : vector<8x32xf32>
    %cst_31 = arith.constant 1.000000e+00 : f32
    %34 = vector.broadcast %cst_31 : f32 to vector<8x32xf32>
    %35 = arith.addf %34, %33 : vector<8x32xf32>
    %36 = arith.divf %34, %35 : vector<8x32xf32>
    %37 = vector.extract_strided_slice %30 {offsets = [0, 32], sizes = [8, 32], strides = [1, 1]} : vector<8x128xf32> to vector<8x32xf32>
    %38 = arith.negf %37 : vector<8x32xf32>
    %39 = math.exp %38 : vector<8x32xf32>
    %cst_32 = arith.constant 1.000000e+00 : f32
    %40 = vector.broadcast %cst_32 : f32 to vector<8x32xf32>
    %41 = arith.addf %40, %39 : vector<8x32xf32>
    %42 = arith.divf %40, %41 : vector<8x32xf32>
    %43 = vector.extract_strided_slice %30 {offsets = [0, 64], sizes = [8, 32], strides = [1, 1]} : vector<8x128xf32> to vector<8x32xf32>
    %44 = arith.negf %43 : vector<8x32xf32>
    %45 = math.exp %44 : vector<8x32xf32>
    %cst_33 = arith.constant 1.000000e+00 : f32
    %46 = vector.broadcast %cst_33 : f32 to vector<8x32xf32>
    %47 = arith.addf %46, %45 : vector<8x32xf32>
    %48 = arith.divf %46, %47 : vector<8x32xf32>
    %49 = vector.extract_strided_slice %30 {offsets = [0, 96], sizes = [8, 32], strides = [1, 1]} : vector<8x128xf32> to vector<8x32xf32>
    %50 = math.tanh %49 : vector<8x32xf32>
    %51 = arith.mulf %42, %18 : vector<8x32xf32>
    %52 = arith.mulf %36, %50 : vector<8x32xf32>
    %53 = arith.addf %51, %52 : vector<8x32xf32>
    %54 = math.tanh %53 : vector<8x32xf32>
    %55 = arith.mulf %48, %54 : vector<8x32xf32>
    %56 = arith.index_cast %20 : i32 to index
    %c0_34 = arith.constant 0 : index
    %57 = vector.load %arg12[%56, %c0_34] : memref<64x32xf32, #tpu.memory_space<vmem>>, vector<8x32xf32>
    tpu.vector_store %arg12[%56, %c0_34], %55 {strides = array<i32>} : memref<64x32xf32, #tpu.memory_space<vmem>>, vector<8x32xf32>,
    %c1_i32 = arith.constant 1 : i32
    %c8_i32_35 = arith.constant 8 : i32
    %58 = arith.muli %c1_i32, %c8_i32_35 : i32
    %59 = tpu.assume_multiple %58, 8 : i32
    %60 = arith.truncf %55 : vector<8x32xf32> to vector<8x32xbf16>
    %c0_36 = arith.constant 0 : index
    %c0_37 = arith.constant 0 : index
    %61 = vector.load %arg8[%c0_36, %c0_37] : memref<32x128xbf16, #tpu.memory_space<vmem>>, vector<32x128xbf16>
    %cst_38 = arith.constant dense<0.000000e+00> : vector<8x128xf32>
    %62 = tpu.matmul %60, %61, %cst_38 {dimension_numbers = #tpu.dot_dimension_numbers<[1], [0], [0], [1], [0, 0, 1, 1], [], []>} : vector<8x32xbf16>, vector<32x128xbf16>, vector<8x128xf32> -> vector<8x128xf32>
    %63 = arith.index_cast %59 : i32 to index
    %c0_39 = arith.constant 0 : index
    %64 = vector.load %arg13[%63, %c0_39] : memref<64x128xf32, #tpu.memory_space<vmem>>, vector<8x128xf32>
    %65 = arith.mulf %5, %62 : vector<8x128xf32>
    %66 = arith.truncf %65 : vector<8x128xf32> to vector<8x128xbf16>
    %c0_40 = arith.constant 0 : index
    %c0_41 = arith.constant 0 : index
    %67 = vector.load %arg10[%c0_40, %c0_41] : memref<128x128xbf16, #tpu.memory_space<vmem>>, vector<128x128xbf16>
    %cst_42 = arith.constant dense<0.000000e+00> : vector<8x128xf32>
    %68 = tpu.matmul %66, %67, %cst_42 {dimension_numbers = #tpu.dot_dimension_numbers<[1], [0], [0], [1], [0, 0, 1, 1], [], []>} : vector<8x128xbf16>, vector<128x128xbf16>, vector<8x128xf32> -> vector<8x128xf32>
    %69 = arith.addf %64, %68 : vector<8x128xf32>
    %70 = vector.extract_strided_slice %69 {offsets = [0, 0], sizes = [8, 32], strides = [1, 1]} : vector<8x128xf32> to vector<8x32xf32>
    %71 = arith.negf %70 : vector<8x32xf32>
    %72 = math.exp %71 : vector<8x32xf32>
    %cst_43 = arith.constant 1.000000e+00 : f32
    %73 = vector.broadcast %cst_43 : f32 to vector<8x32xf32>
    %74 = arith.addf %73, %72 : vector<8x32xf32>
    %75 = arith.divf %73, %74 : vector<8x32xf32>
    %76 = vector.extract_strided_slice %69 {offsets = [0, 32], sizes = [8, 32], strides = [1, 1]} : vector<8x128xf32> to vector<8x32xf32>
    %77 = arith.negf %76 : vector<8x32xf32>
    %78 = math.exp %77 : vector<8x32xf32>
    %cst_44 = arith.constant 1.000000e+00 : f32
    %79 = vector.broadcast %cst_44 : f32 to vector<8x32xf32>
    %80 = arith.addf %79, %78 : vector<8x32xf32>
    %81 = arith.divf %79, %80 : vector<8x32xf32>
    %82 = vector.extract_strided_slice %69 {offsets = [0, 64], sizes = [8, 32], strides = [1, 1]} : vector<8x128xf32> to vector<8x32xf32>
    %83 = arith.negf %82 : vector<8x32xf32>
    %84 = math.exp %83 : vector<8x32xf32>
    %cst_45 = arith.constant 1.000000e+00 : f32
    %85 = vector.broadcast %cst_45 : f32 to vector<8x32xf32>
    %86 = arith.addf %85, %84 : vector<8x32xf32>
    %87 = arith.divf %85, %86 : vector<8x32xf32>
    %88 = vector.extract_strided_slice %69 {offsets = [0, 96], sizes = [8, 32], strides = [1, 1]} : vector<8x128xf32> to vector<8x32xf32>
    %89 = math.tanh %88 : vector<8x32xf32>
    %90 = arith.mulf %81, %53 : vector<8x32xf32>
    %91 = arith.mulf %75, %89 : vector<8x32xf32>
    %92 = arith.addf %90, %91 : vector<8x32xf32>
    %93 = math.tanh %92 : vector<8x32xf32>
    %94 = arith.mulf %87, %93 : vector<8x32xf32>
    %95 = arith.index_cast %59 : i32 to index
    %c0_46 = arith.constant 0 : index
    %96 = vector.load %arg12[%95, %c0_46] : memref<64x32xf32, #tpu.memory_space<vmem>>, vector<8x32xf32>
    tpu.vector_store %arg12[%95, %c0_46], %94 {strides = array<i32>} : memref<64x32xf32, #tpu.memory_space<vmem>>, vector<8x32xf32>,
    %c2_i32 = arith.constant 2 : i32
    %c8_i32_47 = arith.constant 8 : i32
    %97 = arith.muli %c2_i32, %c8_i32_47 : i32
    %98 = tpu.assume_multiple %97, 8 : i32
    %99 = arith.truncf %94 : vector<8x32xf32> to vector<8x32xbf16>
    %c0_48 = arith.constant 0 : index
    %c0_49 = arith.constant 0 : index
    %100 = vector.load %arg8[%c0_48, %c0_49] : memref<32x128xbf16, #tpu.memory_space<vmem>>, vector<32x128xbf16>
    %cst_50 = arith.constant dense<0.000000e+00> : vector<8x128xf32>
    %101 = tpu.matmul %99, %100, %cst_50 {dimension_numbers = #tpu.dot_dimension_numbers<[1], [0], [0], [1], [0, 0, 1, 1], [], []>} : vector<8x32xbf16>, vector<32x128xbf16>, vector<8x128xf32> -> vector<8x128xf32>
    %102 = arith.index_cast %98 : i32 to index
    %c0_51 = arith.constant 0 : index
    %103 = vector.load %arg13[%102, %c0_51] : memref<64x128xf32, #tpu.memory_space<vmem>>, vector<8x128xf32>
    %104 = arith.mulf %5, %101 : vector<8x128xf32>
    %105 = arith.truncf %104 : vector<8x128xf32> to vector<8x128xbf16>
    %c0_52 = arith.constant 0 : index
    %c0_53 = arith.constant 0 : index
    %106 = vector.load %arg10[%c0_52, %c0_53] : memref<128x128xbf16, #tpu.memory_space<vmem>>, vector<128x128xbf16>
    %cst_54 = arith.constant dense<0.000000e+00> : vector<8x128xf32>
    %107 = tpu.matmul %105, %106, %cst_54 {dimension_numbers = #tpu.dot_dimension_numbers<[1], [0], [0], [1], [0, 0, 1, 1], [], []>} : vector<8x128xbf16>, vector<128x128xbf16>, vector<8x128xf32> -> vector<8x128xf32>
    %108 = arith.addf %103, %107 : vector<8x128xf32>
    %109 = vector.extract_strided_slice %108 {offsets = [0, 0], sizes = [8, 32], strides = [1, 1]} : vector<8x128xf32> to vector<8x32xf32>
    %110 = arith.negf %109 : vector<8x32xf32>
    %111 = math.exp %110 : vector<8x32xf32>
    %cst_55 = arith.constant 1.000000e+00 : f32
    %112 = vector.broadcast %cst_55 : f32 to vector<8x32xf32>
    %113 = arith.addf %112, %111 : vector<8x32xf32>
    %114 = arith.divf %112, %113 : vector<8x32xf32>
    %115 = vector.extract_strided_slice %108 {offsets = [0, 32], sizes = [8, 32], strides = [1, 1]} : vector<8x128xf32> to vector<8x32xf32>
    %116 = arith.negf %115 : vector<8x32xf32>
    %117 = math.exp %116 : vector<8x32xf32>
    %cst_56 = arith.constant 1.000000e+00 : f32
    %118 = vector.broadcast %cst_56 : f32 to vector<8x32xf32>
    %119 = arith.addf %118, %117 : vector<8x32xf32>
    %120 = arith.divf %118, %119 : vector<8x32xf32>
    %121 = vector.extract_strided_slice %108 {offsets = [0, 64], sizes = [8, 32], strides = [1, 1]} : vector<8x128xf32> to vector<8x32xf32>
    %122 = arith.negf %121 : vector<8x32xf32>
    %123 = math.exp %122 : vector<8x32xf32>
    %cst_57 = arith.constant 1.000000e+00 : f32
    %124 = vector.broadcast %cst_57 : f32 to vector<8x32xf32>
    %125 = arith.addf %124, %123 : vector<8x32xf32>
    %126 = arith.divf %124, %125 : vector<8x32xf32>
    %127 = vector.extract_strided_slice %108 {offsets = [0, 96], sizes = [8, 32], strides = [1, 1]} : vector<8x128xf32> to vector<8x32xf32>
    %128 = math.tanh %127 : vector<8x32xf32>
    %129 = arith.mulf %120, %92 : vector<8x32xf32>
    %130 = arith.mulf %114, %128 : vector<8x32xf32>
    %131 = arith.addf %129, %130 : vector<8x32xf32>
    %132 = math.tanh %131 : vector<8x32xf32>
    %133 = arith.mulf %126, %132 : vector<8x32xf32>
    %134 = arith.index_cast %98 : i32 to index
    %c0_58 = arith.constant 0 : index
    %135 = vector.load %arg12[%134, %c0_58] : memref<64x32xf32, #tpu.memory_space<vmem>>, vector<8x32xf32>
    tpu.vector_store %arg12[%134, %c0_58], %133 {strides = array<i32>} : memref<64x32xf32, #tpu.memory_space<vmem>>, vector<8x32xf32>,
    %c3_i32 = arith.constant 3 : i32
    %c8_i32_59 = arith.constant 8 : i32
    %136 = arith.muli %c3_i32, %c8_i32_59 : i32
    %137 = tpu.assume_multiple %136, 8 : i32
    %138 = arith.truncf %133 : vector<8x32xf32> to vector<8x32xbf16>
    %c0_60 = arith.constant 0 : index
    %c0_61 = arith.constant 0 : index
    %139 = vector.load %arg8[%c0_60, %c0_61] : memref<32x128xbf16, #tpu.memory_space<vmem>>, vector<32x128xbf16>
    %cst_62 = arith.constant dense<0.000000e+00> : vector<8x128xf32>
    %140 = tpu.matmul %138, %139, %cst_62 {dimension_numbers = #tpu.dot_dimension_numbers<[1], [0], [0], [1], [0, 0, 1, 1], [], []>} : vector<8x32xbf16>, vector<32x128xbf16>, vector<8x128xf32> -> vector<8x128xf32>
    %141 = arith.index_cast %137 : i32 to index
    %c0_63 = arith.constant 0 : index
    %142 = vector.load %arg13[%141, %c0_63] : memref<64x128xf32, #tpu.memory_space<vmem>>, vector<8x128xf32>
    %143 = arith.mulf %5, %140 : vector<8x128xf32>
    %144 = arith.truncf %143 : vector<8x128xf32> to vector<8x128xbf16>
    %c0_64 = arith.constant 0 : index
    %c0_65 = arith.constant 0 : index
    %145 = vector.load %arg10[%c0_64, %c0_65] : memref<128x128xbf16, #tpu.memory_space<vmem>>, vector<128x128xbf16>
    %cst_66 = arith.constant dense<0.000000e+00> : vector<8x128xf32>
    %146 = tpu.matmul %144, %145, %cst_66 {dimension_numbers = #tpu.dot_dimension_numbers<[1], [0], [0], [1], [0, 0, 1, 1], [], []>} : vector<8x128xbf16>, vector<128x128xbf16>, vector<8x128xf32> -> vector<8x128xf32>
    %147 = arith.addf %142, %146 : vector<8x128xf32>
    %148 = vector.extract_strided_slice %147 {offsets = [0, 0], sizes = [8, 32], strides = [1, 1]} : vector<8x128xf32> to vector<8x32xf32>
    %149 = arith.negf %148 : vector<8x32xf32>
    %150 = math.exp %149 : vector<8x32xf32>
    %cst_67 = arith.constant 1.000000e+00 : f32
    %151 = vector.broadcast %cst_67 : f32 to vector<8x32xf32>
    %152 = arith.addf %151, %150 : vector<8x32xf32>
    %153 = arith.divf %151, %152 : vector<8x32xf32>
    %154 = vector.extract_strided_slice %147 {offsets = [0, 32], sizes = [8, 32], strides = [1, 1]} : vector<8x128xf32> to vector<8x32xf32>
    %155 = arith.negf %154 : vector<8x32xf32>
    %156 = math.exp %155 : vector<8x32xf32>
    %cst_68 = arith.constant 1.000000e+00 : f32
    %157 = vector.broadcast %cst_68 : f32 to vector<8x32xf32>
    %158 = arith.addf %157, %156 : vector<8x32xf32>
    %159 = arith.divf %157, %158 : vector<8x32xf32>
    %160 = vector.extract_strided_slice %147 {offsets = [0, 64], sizes = [8, 32], strides = [1, 1]} : vector<8x128xf32> to vector<8x32xf32>
    %161 = arith.negf %160 : vector<8x32xf32>
    %162 = math.exp %161 : vector<8x32xf32>
    %cst_69 = arith.constant 1.000000e+00 : f32
    %163 = vector.broadcast %cst_69 : f32 to vector<8x32xf32>
    %164 = arith.addf %163, %162 : vector<8x32xf32>
    %165 = arith.divf %163, %164 : vector<8x32xf32>
    %166 = vector.extract_strided_slice %147 {offsets = [0, 96], sizes = [8, 32], strides = [1, 1]} : vector<8x128xf32> to vector<8x32xf32>
    %167 = math.tanh %166 : vector<8x32xf32>
    %168 = arith.mulf %159, %131 : vector<8x32xf32>
    %169 = arith.mulf %153, %167 : vector<8x32xf32>
    %170 = arith.addf %168, %169 : vector<8x32xf32>
    %171 = math.tanh %170 : vector<8x32xf32>
    %172 = arith.mulf %165, %171 : vector<8x32xf32>
    %173 = arith.index_cast %137 : i32 to index
    %c0_70 = arith.constant 0 : index
    %174 = vector.load %arg12[%173, %c0_70] : memref<64x32xf32, #tpu.memory_space<vmem>>, vector<8x32xf32>
    tpu.vector_store %arg12[%173, %c0_70], %172 {strides = array<i32>} : memref<64x32xf32, #tpu.memory_space<vmem>>, vector<8x32xf32>,
    %c4_i32 = arith.constant 4 : i32
    %c8_i32_71 = arith.constant 8 : i32
    %175 = arith.muli %c4_i32, %c8_i32_71 : i32
    %176 = tpu.assume_multiple %175, 8 : i32
    %177 = arith.truncf %172 : vector<8x32xf32> to vector<8x32xbf16>
    %c0_72 = arith.constant 0 : index
    %c0_73 = arith.constant 0 : index
    %178 = vector.load %arg8[%c0_72, %c0_73] : memref<32x128xbf16, #tpu.memory_space<vmem>>, vector<32x128xbf16>
    %cst_74 = arith.constant dense<0.000000e+00> : vector<8x128xf32>
    %179 = tpu.matmul %177, %178, %cst_74 {dimension_numbers = #tpu.dot_dimension_numbers<[1], [0], [0], [1], [0, 0, 1, 1], [], []>} : vector<8x32xbf16>, vector<32x128xbf16>, vector<8x128xf32> -> vector<8x128xf32>
    %180 = arith.index_cast %176 : i32 to index
    %c0_75 = arith.constant 0 : index
    %181 = vector.load %arg13[%180, %c0_75] : memref<64x128xf32, #tpu.memory_space<vmem>>, vector<8x128xf32>
    %182 = arith.mulf %5, %179 : vector<8x128xf32>
    %183 = arith.truncf %182 : vector<8x128xf32> to vector<8x128xbf16>
    %c0_76 = arith.constant 0 : index
    %c0_77 = arith.constant 0 : index
    %184 = vector.load %arg10[%c0_76, %c0_77] : memref<128x128xbf16, #tpu.memory_space<vmem>>, vector<128x128xbf16>
    %cst_78 = arith.constant dense<0.000000e+00> : vector<8x128xf32>
    %185 = tpu.matmul %183, %184, %cst_78 {dimension_numbers = #tpu.dot_dimension_numbers<[1], [0], [0], [1], [0, 0, 1, 1], [], []>} : vector<8x128xbf16>, vector<128x128xbf16>, vector<8x128xf32> -> vector<8x128xf32>
    %186 = arith.addf %181, %185 : vector<8x128xf32>
    %187 = vector.extract_strided_slice %186 {offsets = [0, 0], sizes = [8, 32], strides = [1, 1]} : vector<8x128xf32> to vector<8x32xf32>
    %188 = arith.negf %187 : vector<8x32xf32>
    %189 = math.exp %188 : vector<8x32xf32>
    %cst_79 = arith.constant 1.000000e+00 : f32
    %190 = vector.broadcast %cst_79 : f32 to vector<8x32xf32>
    %191 = arith.addf %190, %189 : vector<8x32xf32>
    %192 = arith.divf %190, %191 : vector<8x32xf32>
    %193 = vector.extract_strided_slice %186 {offsets = [0, 32], sizes = [8, 32], strides = [1, 1]} : vector<8x128xf32> to vector<8x32xf32>
    %194 = arith.negf %193 : vector<8x32xf32>
    %195 = math.exp %194 : vector<8x32xf32>
    %cst_80 = arith.constant 1.000000e+00 : f32
    %196 = vector.broadcast %cst_80 : f32 to vector<8x32xf32>
    %197 = arith.addf %196, %195 : vector<8x32xf32>
    %198 = arith.divf %196, %197 : vector<8x32xf32>
    %199 = vector.extract_strided_slice %186 {offsets = [0, 64], sizes = [8, 32], strides = [1, 1]} : vector<8x128xf32> to vector<8x32xf32>
    %200 = arith.negf %199 : vector<8x32xf32>
    %201 = math.exp %200 : vector<8x32xf32>
    %cst_81 = arith.constant 1.000000e+00 : f32
    %202 = vector.broadcast %cst_81 : f32 to vector<8x32xf32>
    %203 = arith.addf %202, %201 : vector<8x32xf32>
    %204 = arith.divf %202, %203 : vector<8x32xf32>
    %205 = vector.extract_strided_slice %186 {offsets = [0, 96], sizes = [8, 32], strides = [1, 1]} : vector<8x128xf32> to vector<8x32xf32>
    %206 = math.tanh %205 : vector<8x32xf32>
    %207 = arith.mulf %198, %170 : vector<8x32xf32>
    %208 = arith.mulf %192, %206 : vector<8x32xf32>
    %209 = arith.addf %207, %208 : vector<8x32xf32>
    %210 = math.tanh %209 : vector<8x32xf32>
    %211 = arith.mulf %204, %210 : vector<8x32xf32>
    %212 = arith.index_cast %176 : i32 to index
    %c0_82 = arith.constant 0 : index
    %213 = vector.load %arg12[%212, %c0_82] : memref<64x32xf32, #tpu.memory_space<vmem>>, vector<8x32xf32>
    tpu.vector_store %arg12[%212, %c0_82], %211 {strides = array<i32>} : memref<64x32xf32, #tpu.memory_space<vmem>>, vector<8x32xf32>,
    %c5_i32 = arith.constant 5 : i32
    %c8_i32_83 = arith.constant 8 : i32
    %214 = arith.muli %c5_i32, %c8_i32_83 : i32
    %215 = tpu.assume_multiple %214, 8 : i32
    %216 = arith.truncf %211 : vector<8x32xf32> to vector<8x32xbf16>
    %c0_84 = arith.constant 0 : index
    %c0_85 = arith.constant 0 : index
    %217 = vector.load %arg8[%c0_84, %c0_85] : memref<32x128xbf16, #tpu.memory_space<vmem>>, vector<32x128xbf16>
    %cst_86 = arith.constant dense<0.000000e+00> : vector<8x128xf32>
    %218 = tpu.matmul %216, %217, %cst_86 {dimension_numbers = #tpu.dot_dimension_numbers<[1], [0], [0], [1], [0, 0, 1, 1], [], []>} : vector<8x32xbf16>, vector<32x128xbf16>, vector<8x128xf32> -> vector<8x128xf32>
    %219 = arith.index_cast %215 : i32 to index
    %c0_87 = arith.constant 0 : index
    %220 = vector.load %arg13[%219, %c0_87] : memref<64x128xf32, #tpu.memory_space<vmem>>, vector<8x128xf32>
    %221 = arith.mulf %5, %218 : vector<8x128xf32>
    %222 = arith.truncf %221 : vector<8x128xf32> to vector<8x128xbf16>
    %c0_88 = arith.constant 0 : index
    %c0_89 = arith.constant 0 : index
    %223 = vector.load %arg10[%c0_88, %c0_89] : memref<128x128xbf16, #tpu.memory_space<vmem>>, vector<128x128xbf16>
    %cst_90 = arith.constant dense<0.000000e+00> : vector<8x128xf32>
    %224 = tpu.matmul %222, %223, %cst_90 {dimension_numbers = #tpu.dot_dimension_numbers<[1], [0], [0], [1], [0, 0, 1, 1], [], []>} : vector<8x128xbf16>, vector<128x128xbf16>, vector<8x128xf32> -> vector<8x128xf32>
    %225 = arith.addf %220, %224 : vector<8x128xf32>
    %226 = vector.extract_strided_slice %225 {offsets = [0, 0], sizes = [8, 32], strides = [1, 1]} : vector<8x128xf32> to vector<8x32xf32>
    %227 = arith.negf %226 : vector<8x32xf32>
    %228 = math.exp %227 : vector<8x32xf32>
    %cst_91 = arith.constant 1.000000e+00 : f32
    %229 = vector.broadcast %cst_91 : f32 to vector<8x32xf32>
    %230 = arith.addf %229, %228 : vector<8x32xf32>
    %231 = arith.divf %229, %230 : vector<8x32xf32>
    %232 = vector.extract_strided_slice %225 {offsets = [0, 32], sizes = [8, 32], strides = [1, 1]} : vector<8x128xf32> to vector<8x32xf32>
    %233 = arith.negf %232 : vector<8x32xf32>
    %234 = math.exp %233 : vector<8x32xf32>
    %cst_92 = arith.constant 1.000000e+00 : f32
    %235 = vector.broadcast %cst_92 : f32 to vector<8x32xf32>
    %236 = arith.addf %235, %234 : vector<8x32xf32>
    %237 = arith.divf %235, %236 : vector<8x32xf32>
    %238 = vector.extract_strided_slice %225 {offsets = [0, 64], sizes = [8, 32], strides = [1, 1]} : vector<8x128xf32> to vector<8x32xf32>
    %239 = arith.negf %238 : vector<8x32xf32>
    %240 = math.exp %239 : vector<8x32xf32>
    %cst_93 = arith.constant 1.000000e+00 : f32
    %241 = vector.broadcast %cst_93 : f32 to vector<8x32xf32>
    %242 = arith.addf %241, %240 : vector<8x32xf32>
    %243 = arith.divf %241, %242 : vector<8x32xf32>
    %244 = vector.extract_strided_slice %225 {offsets = [0, 96], sizes = [8, 32], strides = [1, 1]} : vector<8x128xf32> to vector<8x32xf32>
    %245 = math.tanh %244 : vector<8x32xf32>
    %246 = arith.mulf %237, %209 : vector<8x32xf32>
    %247 = arith.mulf %231, %245 : vector<8x32xf32>
    %248 = arith.addf %246, %247 : vector<8x32xf32>
    %249 = math.tanh %248 : vector<8x32xf32>
    %250 = arith.mulf %243, %249 : vector<8x32xf32>
    %251 = arith.index_cast %215 : i32 to index
    %c0_94 = arith.constant 0 : index
    %252 = vector.load %arg12[%251, %c0_94] : memref<64x32xf32, #tpu.memory_space<vmem>>, vector<8x32xf32>
    tpu.vector_store %arg12[%251, %c0_94], %250 {strides = array<i32>} : memref<64x32xf32, #tpu.memory_space<vmem>>, vector<8x32xf32>,
    %c6_i32 = arith.constant 6 : i32
    %c8_i32_95 = arith.constant 8 : i32
    %253 = arith.muli %c6_i32, %c8_i32_95 : i32
    %254 = tpu.assume_multiple %253, 8 : i32
    %255 = arith.truncf %250 : vector<8x32xf32> to vector<8x32xbf16>
    %c0_96 = arith.constant 0 : index
    %c0_97 = arith.constant 0 : index
    %256 = vector.load %arg8[%c0_96, %c0_97] : memref<32x128xbf16, #tpu.memory_space<vmem>>, vector<32x128xbf16>
    %cst_98 = arith.constant dense<0.000000e+00> : vector<8x128xf32>
    %257 = tpu.matmul %255, %256, %cst_98 {dimension_numbers = #tpu.dot_dimension_numbers<[1], [0], [0], [1], [0, 0, 1, 1], [], []>} : vector<8x32xbf16>, vector<32x128xbf16>, vector<8x128xf32> -> vector<8x128xf32>
    %258 = arith.index_cast %254 : i32 to index
    %c0_99 = arith.constant 0 : index
    %259 = vector.load %arg13[%258, %c0_99] : memref<64x128xf32, #tpu.memory_space<vmem>>, vector<8x128xf32>
    %260 = arith.mulf %5, %257 : vector<8x128xf32>
    %261 = arith.truncf %260 : vector<8x128xf32> to vector<8x128xbf16>
    %c0_100 = arith.constant 0 : index
    %c0_101 = arith.constant 0 : index
    %262 = vector.load %arg10[%c0_100, %c0_101] : memref<128x128xbf16, #tpu.memory_space<vmem>>, vector<128x128xbf16>
    %cst_102 = arith.constant dense<0.000000e+00> : vector<8x128xf32>
    %263 = tpu.matmul %261, %262, %cst_102 {dimension_numbers = #tpu.dot_dimension_numbers<[1], [0], [0], [1], [0, 0, 1, 1], [], []>} : vector<8x128xbf16>, vector<128x128xbf16>, vector<8x128xf32> -> vector<8x128xf32>
    %264 = arith.addf %259, %263 : vector<8x128xf32>
    %265 = vector.extract_strided_slice %264 {offsets = [0, 0], sizes = [8, 32], strides = [1, 1]} : vector<8x128xf32> to vector<8x32xf32>
    %266 = arith.negf %265 : vector<8x32xf32>
    %267 = math.exp %266 : vector<8x32xf32>
    %cst_103 = arith.constant 1.000000e+00 : f32
    %268 = vector.broadcast %cst_103 : f32 to vector<8x32xf32>
    %269 = arith.addf %268, %267 : vector<8x32xf32>
    %270 = arith.divf %268, %269 : vector<8x32xf32>
    %271 = vector.extract_strided_slice %264 {offsets = [0, 32], sizes = [8, 32], strides = [1, 1]} : vector<8x128xf32> to vector<8x32xf32>
    %272 = arith.negf %271 : vector<8x32xf32>
    %273 = math.exp %272 : vector<8x32xf32>
    %cst_104 = arith.constant 1.000000e+00 : f32
    %274 = vector.broadcast %cst_104 : f32 to vector<8x32xf32>
    %275 = arith.addf %274, %273 : vector<8x32xf32>
    %276 = arith.divf %274, %275 : vector<8x32xf32>
    %277 = vector.extract_strided_slice %264 {offsets = [0, 64], sizes = [8, 32], strides = [1, 1]} : vector<8x128xf32> to vector<8x32xf32>
    %278 = arith.negf %277 : vector<8x32xf32>
    %279 = math.exp %278 : vector<8x32xf32>
    %cst_105 = arith.constant 1.000000e+00 : f32
    %280 = vector.broadcast %cst_105 : f32 to vector<8x32xf32>
    %281 = arith.addf %280, %279 : vector<8x32xf32>
    %282 = arith.divf %280, %281 : vector<8x32xf32>
    %283 = vector.extract_strided_slice %264 {offsets = [0, 96], sizes = [8, 32], strides = [1, 1]} : vector<8x128xf32> to vector<8x32xf32>
    %284 = math.tanh %283 : vector<8x32xf32>
    %285 = arith.mulf %276, %248 : vector<8x32xf32>
    %286 = arith.mulf %270, %284 : vector<8x32xf32>
    %287 = arith.addf %285, %286 : vector<8x32xf32>
    %288 = math.tanh %287 : vector<8x32xf32>
    %289 = arith.mulf %282, %288 : vector<8x32xf32>
    %290 = arith.index_cast %254 : i32 to index
    %c0_106 = arith.constant 0 : index
    %291 = vector.load %arg12[%290, %c0_106] : memref<64x32xf32, #tpu.memory_space<vmem>>, vector<8x32xf32>
    tpu.vector_store %arg12[%290, %c0_106], %289 {strides = array<i32>} : memref<64x32xf32, #tpu.memory_space<vmem>>, vector<8x32xf32>,
    %c7_i32 = arith.constant 7 : i32
    %c8_i32_107 = arith.constant 8 : i32
    %292 = arith.muli %c7_i32, %c8_i32_107 : i32
    %293 = tpu.assume_multiple %292, 8 : i32
    %294 = arith.truncf %289 : vector<8x32xf32> to vector<8x32xbf16>
    %c0_108 = arith.constant 0 : index
    %c0_109 = arith.constant 0 : index
    %295 = vector.load %arg8[%c0_108, %c0_109] : memref<32x128xbf16, #tpu.memory_space<vmem>>, vector<32x128xbf16>
    %cst_110 = arith.constant dense<0.000000e+00> : vector<8x128xf32>
    %296 = tpu.matmul %294, %295, %cst_110 {dimension_numbers = #tpu.dot_dimension_numbers<[1], [0], [0], [1], [0, 0, 1, 1], [], []>} : vector<8x32xbf16>, vector<32x128xbf16>, vector<8x128xf32> -> vector<8x128xf32>
    %297 = arith.index_cast %293 : i32 to index
    %c0_111 = arith.constant 0 : index
    %298 = vector.load %arg13[%297, %c0_111] : memref<64x128xf32, #tpu.memory_space<vmem>>, vector<8x128xf32>
    %299 = arith.mulf %5, %296 : vector<8x128xf32>
    %300 = arith.truncf %299 : vector<8x128xf32> to vector<8x128xbf16>
    %c0_112 = arith.constant 0 : index
    %c0_113 = arith.constant 0 : index
    %301 = vector.load %arg10[%c0_112, %c0_113] : memref<128x128xbf16, #tpu.memory_space<vmem>>, vector<128x128xbf16>
    %cst_114 = arith.constant dense<0.000000e+00> : vector<8x128xf32>
    %302 = tpu.matmul %300, %301, %cst_114 {dimension_numbers = #tpu.dot_dimension_numbers<[1], [0], [0], [1], [0, 0, 1, 1], [], []>} : vector<8x128xbf16>, vector<128x128xbf16>, vector<8x128xf32> -> vector<8x128xf32>
    %303 = arith.addf %298, %302 : vector<8x128xf32>
    %304 = vector.extract_strided_slice %303 {offsets = [0, 0], sizes = [8, 32], strides = [1, 1]} : vector<8x128xf32> to vector<8x32xf32>
    %305 = arith.negf %304 : vector<8x32xf32>
    %306 = math.exp %305 : vector<8x32xf32>
    %cst_115 = arith.constant 1.000000e+00 : f32
    %307 = vector.broadcast %cst_115 : f32 to vector<8x32xf32>
    %308 = arith.addf %307, %306 : vector<8x32xf32>
    %309 = arith.divf %307, %308 : vector<8x32xf32>
    %310 = vector.extract_strided_slice %303 {offsets = [0, 32], sizes = [8, 32], strides = [1, 1]} : vector<8x128xf32> to vector<8x32xf32>
    %311 = arith.negf %310 : vector<8x32xf32>
    %312 = math.exp %311 : vector<8x32xf32>
    %cst_116 = arith.constant 1.000000e+00 : f32
    %313 = vector.broadcast %cst_116 : f32 to vector<8x32xf32>
    %314 = arith.addf %313, %312 : vector<8x32xf32>
    %315 = arith.divf %313, %314 : vector<8x32xf32>
    %316 = vector.extract_strided_slice %303 {offsets = [0, 64], sizes = [8, 32], strides = [1, 1]} : vector<8x128xf32> to vector<8x32xf32>
    %317 = arith.negf %316 : vector<8x32xf32>
    %318 = math.exp %317 : vector<8x32xf32>
    %cst_117 = arith.constant 1.000000e+00 : f32
    %319 = vector.broadcast %cst_117 : f32 to vector<8x32xf32>
    %320 = arith.addf %319, %318 : vector<8x32xf32>
    %321 = arith.divf %319, %320 : vector<8x32xf32>
    %322 = vector.extract_strided_slice %303 {offsets = [0, 96], sizes = [8, 32], strides = [1, 1]} : vector<8x128xf32> to vector<8x32xf32>
    %323 = math.tanh %322 : vector<8x32xf32>
    %324 = arith.mulf %315, %287 : vector<8x32xf32>
    %325 = arith.mulf %309, %323 : vector<8x32xf32>
    %326 = arith.addf %324, %325 : vector<8x32xf32>
    %327 = math.tanh %326 : vector<8x32xf32>
    %328 = arith.mulf %321, %327 : vector<8x32xf32>
    %329 = arith.index_cast %293 : i32 to index
    %c0_118 = arith.constant 0 : index
    %330 = vector.load %arg12[%329, %c0_118] : memref<64x32xf32, #tpu.memory_space<vmem>>, vector<8x32xf32>
    tpu.vector_store %arg12[%329, %c0_118], %328 {strides = array<i32>} : memref<64x32xf32, #tpu.memory_space<vmem>>, vector<8x32xf32>,
    %c8_i32_119 = arith.constant 8 : i32
    return
  }
}

</mosaic_0001>

<llo_original>
// kernel: tpu_custom_call.1
$region0: #{tpu_custom_call.1}
  #allocation0 [shape = 'u32[]', space=smem, size = 0x4, offset = 0x4, fixed_abs, tag = 'smem constant byte address 0x4 - core index']
  #allocation1 [shape = 'u32[144,128]{1,0:T(1,128)}', space=vmem, size = 0x12000, scoped, tag = 'internal scratch']
  #allocation2 [shape = 'f32[64,128]{1,0:T(8,128)}', space=vmem, size = 0x8000, scoped, tag = 'scratch operand']
  %s0 = inlined_call_operand.vmem [shape: bf16[64,32], index: 0, kind: input, shape index: {}]
  %s1 = inlined_call_operand.hbm [shape: bf16[8,16], index: 1, kind: input, shape index: {}]
  %s2 = inlined_call_operand.vmem [shape: bf16[64,16], index: 2, kind: input, shape index: {}]
  %s3 = inlined_call_operand.vmem [shape: f32[8,32], index: 3, kind: input, shape index: {}]
  %s4 = inlined_call_operand.vmem [shape: f32[8,32], index: 4, kind: input, shape index: {}]
  %s5 = inlined_call_operand.vmem [shape: bf16[32,128], index: 5, kind: input, shape index: {}]
  %s6 = inlined_call_operand.hbm [shape: bf16[16,128], index: 6, kind: input, shape index: {}]
  %s7 = inlined_call_operand.hbm [shape: bf16[16,128], index: 7, kind: input, shape index: {}]
  %s8 = inlined_call_operand.vmem [shape: bf16[32,128], index: 8, kind: input, shape index: {}]
  %s9 = inlined_call_operand.vmem [shape: bf16[128,128], index: 9, kind: input, shape index: {}]
  %s10 = inlined_call_operand.hbm [shape: bf16[128,128], index: 10, kind: input, shape index: {}]
  %s11 = inlined_call_operand.vmem [shape: f32[1,128], index: 11, kind: input, shape index: {}]
  %s12 = inlined_call_operand.vmem [shape: f32[64,32], index: 12, kind: output, shape index: {}]
  %s13 = sld [smem:[#allocation0]]
  $region74: #{tpu_custom_call.1} parent=0
    _
  %s15 = ssub.s32 1, %s13
  %s16 = scalar_select 0, %s15, %s13
  $region1: #{tpu_custom_call.1} parent=0
    #allocation3 [shape = 'u8[2048]{0}', space=vmem, size = 0x800, scoped, tag = 'input window, operand 1, single buffered']
    #allocation4 [shape = 's32[1]{0}', space=sflag, size = 0x4, scoped, tag = 'scoped memory for tpu_custom_call.1']
    #allocation5 [shape = 'u8[4096]{0}', space=vmem, size = 0x1000, scoped, tag = 'input window, operand 6, single buffered']
    #allocation6 [shape = 's32[1]{0}', space=sflag, size = 0x4, scoped, tag = 'scoped memory for tpu_custom_call.1']
    #allocation7 [shape = 'u8[4096]{0}', space=vmem, size = 0x1000, scoped, tag = 'input window, operand 7, single buffered']
    #allocation8 [shape = 'u8[32768]{0}', space=vmem, size = 0x8000, scoped, tag = 'input window, operand 10, single buffered']
    #allocation9 [shape = 's32[1]{0}', space=sflag, size = 0x4, scoped, tag = 'scoped memory for tpu_custom_call.1']
    %17 = vsyncpa [#allocation4], 0
    %18 = vsyncpa [#allocation6], 0
    %19 = vsyncpa [#allocation9], 0
    // Predicated region
    $region2: #{tpu_custom_call.1} parent=1 // pred_check
      _
    $region3: #{tpu_custom_call.1} parent=1 // pred_check_branch
      %21 = sbr.rel (0) target = $region5
    $region4: #{tpu_custom_call.1} parent=1 // pred_region
      _
    $region5: #{tpu_custom_call.1} parent=1 // pred_fallthru
      _
    // Predicated region
    $region6: #{tpu_custom_call.1} parent=1 // pred_check
      _
    $region7: #{tpu_custom_call.1} parent=1 // pred_check_branch
      %23 = sbr.rel (0) target = $region9
    $region8: #{tpu_custom_call.1} parent=1 // pred_region
      %s25 = ssub.s32 64, 64
      %26 = vsyncadd [#allocation4], %s25
      %s28 = sshll.u32 [#allocation3], 4
      %s29 = int_to_ptr.vmem [resolvable:$true] %s28
      %31 = dma.hbm_to_vmem [thread:$0]  %s1, 64, %s29, [#allocation4]
    $region9: #{tpu_custom_call.1} parent=1 // pred_fallthru
      _
    // Predicated region
    $region10: #{tpu_custom_call.1} parent=1 // pred_check
      _
    $region11: #{tpu_custom_call.1} parent=1 // pred_check_branch
      %33 = sbr.rel (0) target = $region13
    $region12: #{tpu_custom_call.1} parent=1 // pred_region
      _
    $region13: #{tpu_custom_call.1} parent=1 // pred_fallthru
      _
    // Predicated region
    $region14: #{tpu_custom_call.1} parent=1 // pred_check
      _
    $region15: #{tpu_custom_call.1} parent=1 // pred_check_branch
      %35 = sbr.rel (0) target = $region17
    $region16: #{tpu_custom_call.1} parent=1 // pred_region
      _
    $region17: #{tpu_custom_call.1} parent=1 // pred_fallthru
      _
    // Predicated region
    $region18: #{tpu_custom_call.1} parent=1 // pred_check
      _
    $region19: #{tpu_custom_call.1} parent=1 // pred_check_branch
      %37 = sbr.rel (0) target = $region21
    $region20: #{tpu_custom_call.1} parent=1 // pred_region
      _
    $region21: #{tpu_custom_call.1} parent=1 // pred_fallthru
      _
    // Predicated region
    $region22: #{tpu_custom_call.1} parent=1 // pred_check
      _
    $region23: #{tpu_custom_call.1} parent=1 // pred_check_branch
      %39 = sbr.rel (0) target = $region25
    $region24: #{tpu_custom_call.1} parent=1 // pred_region
      _
    $region25: #{tpu_custom_call.1} parent=1 // pred_fallthru
      _
    // Predicated region
    $region26: #{tpu_custom_call.1} parent=1 // pred_check
      _
    $region27: #{tpu_custom_call.1} parent=1 // pred_check_branch
      %41 = sbr.rel (0) target = $region29
    $region28: #{tpu_custom_call.1} parent=1 // pred_region
      %s43 = ssub.s32 128, 128
      %44 = vsyncadd [#allocation6], %s43
      %s45 = sshll.u32 [#allocation5], 4
      %s46 = int_to_ptr.vmem [resolvable:$true] %s45
      %51 = dma.hbm_to_vmem [thread:$0]  %s6, 128, %s46, [#allocation6], 64, 64, 4
    $region29: #{tpu_custom_call.1} parent=1 // pred_fallthru
      _
    // Predicated region
    $region30: #{tpu_custom_call.1} parent=1 // pred_check
      _
    $region31: #{tpu_custom_call.1} parent=1 // pred_check_branch
      %53 = sbr.rel (0) target = $region33
    $region32: #{tpu_custom_call.1} parent=1 // pred_region
      %s55 = ssub.s32 128, 128
      %56 = vsyncadd [#allocation6], %s55
      %s57 = sshll.u32 [#allocation7], 4
      %s58 = int_to_ptr.vmem [resolvable:$true] %s57
      %63 = dma.hbm_to_vmem [thread:$0]  %s7, 128, %s58, [#allocation6], 64, 64, 4
    $region33: #{tpu_custom_call.1} parent=1 // pred_fallthru
      _
    // Predicated region
    $region34: #{tpu_custom_call.1} parent=1 // pred_check
      _
    $region35: #{tpu_custom_call.1} parent=1 // pred_check_branch
      %65 = sbr.rel (0) target = $region37
    $region36: #{tpu_custom_call.1} parent=1 // pred_region
      _
    $region37: #{tpu_custom_call.1} parent=1 // pred_fallthru
      _
    // Predicated region
    $region38: #{tpu_custom_call.1} parent=1 // pred_check
      _
    $region39: #{tpu_custom_call.1} parent=1 // pred_check_branch
      %67 = sbr.rel (0) target = $region41
    $region40: #{tpu_custom_call.1} parent=1 // pred_region
      _
    $region41: #{tpu_custom_call.1} parent=1 // pred_fallthru
      _
    // Predicated region
    $region42: #{tpu_custom_call.1} parent=1 // pred_check
      _
    $region43: #{tpu_custom_call.1} parent=1 // pred_check_branch
      %69 = sbr.rel (0) target = $region45
    $region44: #{tpu_custom_call.1} parent=1 // pred_region
      %s71 = ssub.s32 1024, 1024
      %72 = vsyncadd [#allocation9], %s71
      %s73 = sshll.u32 [#allocation8], 4
      %s74 = int_to_ptr.vmem [resolvable:$true] %s73
      %79 = dma.hbm_to_vmem [thread:$0]  %s10, 1024, %s74, [#allocation9], 64, 64, 4
    $region45: #{tpu_custom_call.1} parent=1 // pred_fallthru
      _
    // Predicated region
    $region46: #{tpu_custom_call.1} parent=1 // pred_check
      _
    $region47: #{tpu_custom_call.1} parent=1 // pred_check_branch
      %81 = sbr.rel (0) target = $region49
    $region48: #{tpu_custom_call.1} parent=1 // pred_region
      _
    $region49: #{tpu_custom_call.1} parent=1 // pred_fallthru
      _
    // Predicated region
    $region50: #{tpu_custom_call.1} parent=1 // pred_check
      _
    $region51: #{tpu_custom_call.1} parent=1 // pred_check_branch
      %83 = sbr.rel (0) target = $region53
    $region52: #{tpu_custom_call.1} parent=1 // pred_region
      %84 = dma.done [#allocation4], 64
    $region53: #{tpu_custom_call.1} parent=1 // pred_fallthru
      _
    // Predicated region
    $region54: #{tpu_custom_call.1} parent=1 // pred_check
      _
    $region55: #{tpu_custom_call.1} parent=1 // pred_check_branch
      %86 = sbr.rel (0) target = $region57
    $region56: #{tpu_custom_call.1} parent=1 // pred_region
      %87 = dma.done [#allocation6], 128
    $region57: #{tpu_custom_call.1} parent=1 // pred_fallthru
      _
    // Predicated region
    $region58: #{tpu_custom_call.1} parent=1 // pred_check
      _
    $region59: #{tpu_custom_call.1} parent=1 // pred_check_branch
      %89 = sbr.rel (0) target = $region61
    $region60: #{tpu_custom_call.1} parent=1 // pred_region
      %90 = dma.done [#allocation6], 128
    $region61: #{tpu_custom_call.1} parent=1 // pred_fallthru
      _
    // Predicated region
    $region62: #{tpu_custom_call.1} parent=1 // pred_check
      _
    $region63: #{tpu_custom_call.1} parent=1 // pred_check_branch
      %92 = sbr.rel (0) target = $region65
    $region64: #{tpu_custom_call.1} parent=1 // pred_region
      %93 = dma.done [#allocation9], 1024
    $region65: #{tpu_custom_call.1} parent=1 // pred_fallthru
      _
    %v95 = vld [vmem:[%s2] sm:$0xf]
    %v96 = vld [vmem:[%s2 + $0x4] sm:$0xf]
    %v97 = vld [vmem:[%s2 + $0x8] sm:$0xf]
    %v98 = vld [vmem:[%s2 + $0xc] sm:$0xf]
    %v99 = vld [vmem:[%s2 + $0x10] sm:$0xf]
    %v100 = vld [vmem:[%s2 + $0x14] sm:$0xf]
    %v101 = vld [vmem:[%s2 + $0x18] sm:$0xf]
    %v102 = vld [vmem:[%s2 + $0x1c] sm:$0xf]
    %v103 = vld [vmem:[#allocation5] sm:$0xf]
    %v104 = vld [vmem:[#allocation5 + $0x4] sm:$0xf]
    %v113 = vunpack.c.l.b16 %v95
    %v114 = vunpack.c.l.b16 %v96
    %v115 = vunpack.c.l.b16 %v97
    %v116 = vunpack.c.l.b16 %v98
    %v117 = vunpack.c.l.b16 %v99
    %v118 = vunpack.c.l.b16 %v100
    %v119 = vunpack.c.l.b16 %v101
    %v120 = vunpack.c.l.b16 %v102
    %v121 = vpack.c.b16 %v114, %v113
    %v122 = vpack.c.b16 %v116, %v115
    %v123 = vpack.c.b16 %v118, %v117
    %v124 = vpack.c.b16 %v120, %v119
    %v127 = vunpack.c.l.b16 %v103
    %v128 = vunpack.c.l.b16 %v104
    %v129 = vpack.c.b16 %v128, %v127
    %vm131 = vcmask 130048
    %v133 = vsel %vm131, %v121, 0
    %v136 = vsel %vm131, %v122, 0
    %v139 = vsel %vm131, %v123, 0
    %v142 = vsel %vm131, %v124, 0
    %144 = vmatprep.subr.bf16.mxu0 0
    %145 = vmatpush1.bf16.msra.mxu0 %v129
    %146 = vmatprep.subr.bf16.mxu0 0
    %147 = vmatpush1.bf16.msra.mxu0 0
    %148 = vmatprep.subr.bf16.mxu0 0
    %149 = vmatpush1.bf16.msra.mxu0 0
    %150 = vmatprep.subr.bf16.mxu0 0
    %151 = vmatpush1.bf16.msra.mxu0 0
    %152 = vmatprep.subr.bf16.mxu0 0
    %153 = vmatpush1.bf16.msra.mxu0 0
    %154 = vmatprep.subr.bf16.mxu0 0
    %155 = vmatpush1.bf16.msra.mxu0 0
    %156 = vmatprep.subr.bf16.mxu0 0
    %157 = vmatpush1.bf16.msra.mxu0 0
    %158 = vmatprep.subr.bf16.mxu0 0
    %159 = vmatpush1.bf16.msra.mxu0 0
    %160 = vmatprep.subr.bf16.mxu0 0
    %161 = vmatpush1.bf16.msra.mxu0 0
    %162 = vmatprep.subr.bf16.mxu0 0
    %163 = vmatpush1.bf16.msra.mxu0 0
    %164 = vmatprep.subr.bf16.mxu0 0
    %165 = vmatpush1.bf16.msra.mxu0 0
    %166 = vmatprep.subr.bf16.mxu0 0
    %167 = vmatpush1.bf16.msra.mxu0 0
    %168 = vmatprep.subr.bf16.mxu0 0
    %169 = vmatpush1.bf16.msra.mxu0 0
    %170 = vmatprep.subr.bf16.mxu0 0
    %171 = vmatpush1.bf16.msra.mxu0 0
    %172 = vmatprep.subr.bf16.mxu0 0
    %173 = vmatpush1.bf16.msra.mxu0 0
    %174 = vmatprep.subr.bf16.mxu0 0
    %175 = vmatpush1.bf16.msra.mxu0 0
    %176 = vmatprep.mubr.bf16.mxu0 0
    %177 = vmatmul.mubr.bf16.gmra.mrb[0].mxu0 %v133
    %v178 = vpop.f32.mrb[0].mxu0
    %v179 = vadd.f32 0.0, %v178
    %v180 = vpop.f32.mrb[0].mxu0
    %v181 = vpop.f32.mrb[0].mxu0
    %v182 = vadd.f32 0.0, %v181
    %v183 = vpop.f32.mrb[0].mxu0
    %184 = vmatprep.mubr.bf16.mxu0 0
    %185 = vmatmul.mubr.bf16.gmra.mrb[0].mxu0 %v136
    %v186 = vpop.f32.mrb[0].mxu0
    %v187 = vadd.f32 0.0, %v186
    %v188 = vpop.f32.mrb[0].mxu0
    %v189 = vpop.f32.mrb[0].mxu0
    %v190 = vadd.f32 0.0, %v189
    %v191 = vpop.f32.mrb[0].mxu0
    %192 = vmatprep.mubr.bf16.mxu0 0
    %193 = vmatmul.mubr.bf16.gmra.mrb[0].mxu0 %v139
    %v194 = vpop.f32.mrb[0].mxu0
    %v195 = vadd.f32 0.0, %v194
    %v196 = vpop.f32.mrb[0].mxu0
    %v197 = vpop.f32.mrb[0].mxu0
    %v198 = vadd.f32 0.0, %v197
    %v199 = vpop.f32.mrb[0].mxu0
    %200 = vmatprep.mubr.bf16.mxu0 0
    %201 = vmatmul.mubr.bf16.gmra.mrb[0].mxu0 %v142
    %v202 = vpop.f32.mrb[0].mxu0
    %v203 = vadd.f32 0.0, %v202
    %v204 = vpop.f32.mrb[0].mxu0
    %v205 = vpop.f32.mrb[0].mxu0
    %v206 = vadd.f32 0.0, %v205
    %v207 = vpop.f32.mrb[0].mxu0
    %208 = vdwg.mxu0
    %v209 = vld [vmem:[#allocation3] sm:$0xf]
    %v210 = vld [vmem:[#allocation7] sm:$0xf]
    %v211 = vld [vmem:[#allocation7 + $0x4] sm:$0xf]
    %v214 = vunpack.c.l.b16 %v210
    %v215 = vunpack.c.l.b16 %v211
    %v216 = vpack.c.b16 %v215, %v214
    %v219 = vsel %vm131, %v209, 0
    %221 = vmatprep.subr.bf16.mxu0 0
    %222 = vmatpush1.bf16.msra.mxu0 %v216
    %223 = vmatprep.subr.bf16.mxu0 0
    %224 = vmatpush1.bf16.msra.mxu0 0
    %225 = vmatprep.subr.bf16.mxu0 0
    %226 = vmatpush1.bf16.msra.mxu0 0
    %227 = vmatprep.subr.bf16.mxu0 0
    %228 = vmatpush1.bf16.msra.mxu0 0
    %229 = vmatprep.subr.bf16.mxu0 0
    %230 = vmatpush1.bf16.msra.mxu0 0
    %231 = vmatprep.subr.bf16.mxu0 0
    %232 = vmatpush1.bf16.msra.mxu0 0
    %233 = vmatprep.subr.bf16.mxu0 0
    %234 = vmatpush1.bf16.msra.mxu0 0
    %235 = vmatprep.subr.bf16.mxu0 0
    %236 = vmatpush1.bf16.msra.mxu0 0
    %237 = vmatprep.subr.bf16.mxu0 0
    %238 = vmatpush1.bf16.msra.mxu0 0
    %239 = vmatprep.subr.bf16.mxu0 0
    %240 = vmatpush1.bf16.msra.mxu0 0
    %241 = vmatprep.subr.bf16.mxu0 0
    %242 = vmatpush1.bf16.msra.mxu0 0
    %243 = vmatprep.subr.bf16.mxu0 0
    %244 = vmatpush1.bf16.msra.mxu0 0
    %245 = vmatprep.subr.bf16.mxu0 0
    %246 = vmatpush1.bf16.msra.mxu0 0
    %247 = vmatprep.subr.bf16.mxu0 0
    %248 = vmatpush1.bf16.msra.mxu0 0
    %249 = vmatprep.subr.bf16.mxu0 0
    %250 = vmatpush1.bf16.msra.mxu0 0
    %251 = vmatprep.subr.bf16.mxu0 0
    %252 = vmatpush1.bf16.msra.mxu0 0
    %253 = vmatprep.mubr.bf16.mxu0 0
    %254 = vmatmul.mubr.bf16.gmra.mrb[0].mxu0 %v219
    %v255 = vpop.f32.mrb[0].mxu0
    %v256 = vadd.f32 0.0, %v255
    %v257 = vpop.f32.mrb[0].mxu0
    %v258 = vpop.f32.mrb[0].mxu0
    %v259 = vpop.f32.mrb[0].mxu0
    %260 = vdwg.mxu0
    %v261 = vld [vmem:[%s0] sm:$0xf]
    %v262 = vld [vmem:[%s0 + $0x4] sm:$0xf]
    %v263 = vld [vmem:[%s0 + $0x8] sm:$0xf]
    %v264 = vld [vmem:[%s0 + $0xc] sm:$0xf]
    %v265 = vld [vmem:[%s0 + $0x10] sm:$0xf]
    %v266 = vld [vmem:[%s0 + $0x14] sm:$0xf]
    %v267 = vld [vmem:[%s0 + $0x18] sm:$0xf]
    %v268 = vld [vmem:[%s0 + $0x1c] sm:$0xf]
    %v269 = vld [vmem:[%s5] sm:$0xf]
    %v270 = vld [vmem:[%s5 + $0x4] sm:$0xf]
    %v271 = vld [vmem:[%s5 + $0x8] sm:$0xf]
    %v272 = vld [vmem:[%s5 + $0xc] sm:$0xf]
    %v281 = vunpack.c.l.b16 %v261
    %v282 = vunpack.c.l.b16 %v262
    %v283 = vunpack.c.l.b16 %v263
    %v284 = vunpack.c.l.b16 %v264
    %v285 = vunpack.c.l.b16 %v265
    %v286 = vunpack.c.l.b16 %v266
    %v287 = vunpack.c.l.b16 %v267
    %v288 = vunpack.c.l.b16 %v268
    %v289 = vpack.c.b16 %v282, %v281
    %v290 = vpack.c.b16 %v284, %v283
    %v291 = vpack.c.b16 %v286, %v285
    %v292 = vpack.c.b16 %v288, %v287
    %v297 = vunpack.c.l.b16 %v269
    %v298 = vunpack.c.l.b16 %v270
    %v299 = vunpack.c.l.b16 %v271
    %v300 = vunpack.c.l.b16 %v272
    %v301 = vpack.c.b16 %v298, %v297
    %v302 = vpack.c.b16 %v300, %v299
    %vm305 = vcmask 261120
    %v307 = vsel %vm305, %v289, 0
    %v310 = vsel %vm305, %v290, 0
    %v313 = vsel %vm305, %v291, 0
    %v316 = vsel %vm305, %v292, 0
    %318 = vmatprep.subr.bf16.mxu0 0
    %319 = vmatpush1.bf16.msra.mxu0 %v301
    %320 = vmatprep.subr.bf16.mxu0 0
    %321 = vmatpush1.bf16.msra.mxu0 %v302
    %322 = vmatprep.subr.bf16.mxu0 0
    %323 = vmatpush1.bf16.msra.mxu0 0
    %324 = vmatprep.subr.bf16.mxu0 0
    %325 = vmatpush1.bf16.msra.mxu0 0
    %326 = vmatprep.subr.bf16.mxu0 0
    %327 = vmatpush1.bf16.msra.mxu0 0
    %328 = vmatprep.subr.bf16.mxu0 0
    %329 = vmatpush1.bf16.msra.mxu0 0
    %330 = vmatprep.subr.bf16.mxu0 0
    %331 = vmatpush1.bf16.msra.mxu0 0
    %332 = vmatprep.subr.bf16.mxu0 0
    %333 = vmatpush1.bf16.msra.mxu0 0
    %334 = vmatprep.subr.bf16.mxu0 0
    %335 = vmatpush1.bf16.msra.mxu0 0
    %336 = vmatprep.subr.bf16.mxu0 0
    %337 = vmatpush1.bf16.msra.mxu0 0
    %338 = vmatprep.subr.bf16.mxu0 0
    %339 = vmatpush1.bf16.msra.mxu0 0
    %340 = vmatprep.subr.bf16.mxu0 0
    %341 = vmatpush1.bf16.msra.mxu0 0
    %342 = vmatprep.subr.bf16.mxu0 0
    %343 = vmatpush1.bf16.msra.mxu0 0
    %344 = vmatprep.subr.bf16.mxu0 0
    %345 = vmatpush1.bf16.msra.mxu0 0
    %346 = vmatprep.subr.bf16.mxu0 0
    %347 = vmatpush1.bf16.msra.mxu0 0
    %348 = vmatprep.subr.bf16.mxu0 0
    %349 = vmatpush1.bf16.msra.mxu0 0
    %350 = vmatprep.mubr.bf16.mxu0 0
    %351 = vmatmul.mubr.bf16.gmra.mrb[0].mxu0 %v307
    %v352 = vpop.f32.mrb[0].mxu0
    %v353 = vadd.f32 0.0, %v352
    %v354 = vpop.f32.mrb[0].mxu0
    %v355 = vpop.f32.mrb[0].mxu0
    %v356 = vadd.f32 0.0, %v355
    %v357 = vpop.f32.mrb[0].mxu0
    %358 = vmatprep.mubr.bf16.mxu0 0
    %359 = vmatmul.mubr.bf16.gmra.mrb[0].mxu0 %v310
    %v360 = vpop.f32.mrb[0].mxu0
    %v361 = vadd.f32 0.0, %v360
    %v362 = vpop.f32.mrb[0].mxu0
    %v363 = vpop.f32.mrb[0].mxu0
    %v364 = vadd.f32 0.0, %v363
    %v365 = vpop.f32.mrb[0].mxu0
    %366 = vmatprep.mubr.bf16.mxu0 0
    %367 = vmatmul.mubr.bf16.gmra.mrb[0].mxu0 %v313
    %v368 = vpop.f32.mrb[0].mxu0
    %v369 = vadd.f32 0.0, %v368
    %v370 = vpop.f32.mrb[0].mxu0
    %v371 = vpop.f32.mrb[0].mxu0
    %v372 = vadd.f32 0.0, %v371
    %v373 = vpop.f32.mrb[0].mxu0
    %374 = vmatprep.mubr.bf16.mxu0 0
    %375 = vmatmul.mubr.bf16.gmra.mrb[0].mxu0 %v316
    %v376 = vpop.f32.mrb[0].mxu0
    %v377 = vadd.f32 0.0, %v376
    %v378 = vpop.f32.mrb[0].mxu0
    %v379 = vpop.f32.mrb[0].mxu0
    %v380 = vadd.f32 0.0, %v379
    %v381 = vpop.f32.mrb[0].mxu0
    %382 = vdwg.mxu0
    %v383 = vmul.f32 %v353, %v179
    %v384 = vmul.f32 %v356, %v182
    %v385 = vmul.f32 %v361, %v187
    %v386 = vmul.f32 %v364, %v190
    %v387 = vmul.f32 %v369, %v195
    %v388 = vmul.f32 %v372, %v198
    %v389 = vmul.f32 %v377, %v203
    %v390 = vmul.f32 %v380, %v206
    %v391 = vpack.c.bf16 %v384, %v383
    %v392 = vpack.c.bf16 %v386, %v385
    %v393 = vpack.c.bf16 %v388, %v387
    %v394 = vpack.c.bf16 %v390, %v389
    %v395 = vld [vmem:[%s9] sm:$0xf]
    %v396 = vld [vmem:[%s9 + $0x4] sm:$0xf]
    %v397 = vld [vmem:[%s9 + $0x8] sm:$0xf]
    %v398 = vld [vmem:[%s9 + $0xc] sm:$0xf]
    %v399 = vld [vmem:[%s9 + $0x10] sm:$0xf]
    %v400 = vld [vmem:[%s9 + $0x14] sm:$0xf]
    %v401 = vld [vmem:[%s9 + $0x18] sm:$0xf]
    %v402 = vld [vmem:[%s9 + $0x1c] sm:$0xf]
    %v403 = vld [vmem:[%s9 + $0x20] sm:$0xf]
    %v404 = vld [vmem:[%s9 + $0x24] sm:$0xf]
    %v405 = vld [vmem:[%s9 + $0x28] sm:$0xf]
    %v406 = vld [vmem:[%s9 + $0x2c] sm:$0xf]
    %v407 = vld [vmem:[%s9 + $0x30] sm:$0xf]
    %v408 = vld [vmem:[%s9 + $0x34] sm:$0xf]
    %v409 = vld [vmem:[%s9 + $0x38] sm:$0xf]
    %v410 = vld [vmem:[%s9 + $0x3c] sm:$0xf]
    %v411 = vld [vmem:[%s11] sm:$0x1]
    %v413 = vlaneseq
    %v414 = vshrl.u32 %v413, 7
    %v415 = vsub.s32 0, %v414
    %v416 = vrot.slane %v411, %v415
    %v434 = vunpack.c.l.b16 %v395
    %v435 = vunpack.c.l.b16 %v396
    %v436 = vunpack.c.l.b16 %v397
    %v437 = vunpack.c.l.b16 %v398
    %v438 = vunpack.c.l.b16 %v399
    %v439 = vunpack.c.l.b16 %v400
    %v440 = vunpack.c.l.b16 %v401
    %v441 = vunpack.c.l.b16 %v402
    %v442 = vunpack.c.l.b16 %v403
    %v443 = vunpack.c.l.b16 %v404
    %v444 = vunpack.c.l.b16 %v405
    %v445 = vunpack.c.l.b16 %v406
    %v446 = vunpack.c.l.b16 %v407
    %v447 = vunpack.c.l.b16 %v408
    %v448 = vunpack.c.l.b16 %v409
    %v449 = vunpack.c.l.b16 %v410
    %v450 = vpack.c.b16 %v435, %v434
    %v451 = vpack.c.b16 %v437, %v436
    %v452 = vpack.c.b16 %v439, %v438
    %v453 = vpack.c.b16 %v441, %v440
    %v454 = vpack.c.b16 %v443, %v442
    %v455 = vpack.c.b16 %v445, %v444
    %v456 = vpack.c.b16 %v447, %v446
    %v457 = vpack.c.b16 %v449, %v448
    %466 = vmatprep.subr.bf16.mxu0 0
    %467 = vmatpush1.bf16.msra.mxu0 %v450
    %468 = vmatprep.subr.bf16.mxu0 0
    %469 = vmatpush1.bf16.msra.mxu0 %v451
    %470 = vmatprep.subr.bf16.mxu0 0
    %471 = vmatpush1.bf16.msra.mxu0 %v452
    %472 = vmatprep.subr.bf16.mxu0 0
    %473 = vmatpush1.bf16.msra.mxu0 %v453
    %474 = vmatprep.subr.bf16.mxu0 0
    %475 = vmatpush1.bf16.msra.mxu0 %v454
    %476 = vmatprep.subr.bf16.mxu0 0
    %477 = vmatpush1.bf16.msra.mxu0 %v455
    %478 = vmatprep.subr.bf16.mxu0 0
    %479 = vmatpush1.bf16.msra.mxu0 %v456
    %480 = vmatprep.subr.bf16.mxu0 0
    %481 = vmatpush1.bf16.msra.mxu0 %v457
    %482 = vmatprep.subr.bf16.mxu0 0
    %483 = vmatpush1.bf16.msra.mxu0 0
    %484 = vmatprep.subr.bf16.mxu0 0
    %485 = vmatpush1.bf16.msra.mxu0 0
    %486 = vmatprep.subr.bf16.mxu0 0
    %487 = vmatpush1.bf16.msra.mxu0 0
    %488 = vmatprep.subr.bf16.mxu0 0
    %489 = vmatpush1.bf16.msra.mxu0 0
    %490 = vmatprep.subr.bf16.mxu0 0
    %491 = vmatpush1.bf16.msra.mxu0 0
    %492 = vmatprep.subr.bf16.mxu0 0
    %493 = vmatpush1.bf16.msra.mxu0 0
    %494 = vmatprep.subr.bf16.mxu0 0
    %495 = vmatpush1.bf16.msra.mxu0 0
    %496 = vmatprep.subr.bf16.mxu0 0
    %497 = vmatpush1.bf16.msra.mxu0 0
    %498 = vmatprep.mubr.bf16.mxu0 0
    %499 = vmatmul.mubr.bf16.gmra.mrb[0].mxu0 %v391
    %v500 = vpop.f32.mrb[0].mxu0
    %v501 = vadd.f32 %v416, %v500
    %v502 = vpop.f32.mrb[0].mxu0
    %v503 = vpop.f32.mrb[0].mxu0
    %v504 = vadd.f32 %v416, %v503
    %v505 = vpop.f32.mrb[0].mxu0
    %506 = vmatprep.mubr.bf16.mxu0 0
    %507 = vmatmul.mubr.bf16.gmra.mrb[0].mxu0 %v392
    %v508 = vpop.f32.mrb[0].mxu0
    %v509 = vadd.f32 %v416, %v508
    %v510 = vpop.f32.mrb[0].mxu0
    %v511 = vpop.f32.mrb[0].mxu0
    %v512 = vadd.f32 %v416, %v511
    %v513 = vpop.f32.mrb[0].mxu0
    %514 = vmatprep.mubr.bf16.mxu0 0
    %515 = vmatmul.mubr.bf16.gmra.mrb[0].mxu0 %v393
    %v516 = vpop.f32.mrb[0].mxu0
    %v517 = vadd.f32 %v416, %v516
    %v518 = vpop.f32.mrb[0].mxu0
    %v519 = vpop.f32.mrb[0].mxu0
    %v520 = vadd.f32 %v416, %v519
    %v521 = vpop.f32.mrb[0].mxu0
    %522 = vmatprep.mubr.bf16.mxu0 0
    %523 = vmatmul.mubr.bf16.gmra.mrb[0].mxu0 %v394
    %v524 = vpop.f32.mrb[0].mxu0
    %v525 = vadd.f32 %v416, %v524
    %v526 = vpop.f32.mrb[0].mxu0
    %v527 = vpop.f32.mrb[0].mxu0
    %v528 = vadd.f32 %v416, %v527
    %v529 = vpop.f32.mrb[0].mxu0
    %530 = vdwg.mxu0
    %531 = vst [vmem:[#allocation2] sm:$0xff] %v501
    %532 = vst [vmem:[#allocation2 + $0x8] sm:$0xff] %v504
    %533 = vst [vmem:[#allocation2 + $0x10] sm:$0xff] %v509
    %534 = vst [vmem:[#allocation2 + $0x18] sm:$0xff] %v512
    %535 = vst [vmem:[#allocation2 + $0x20] sm:$0xff] %v517
    %536 = vst [vmem:[#allocation2 + $0x28] sm:$0xff] %v520
    %537 = vst [vmem:[#allocation2 + $0x30] sm:$0xff] %v525
    %538 = vst [vmem:[#allocation2 + $0x38] sm:$0xff] %v528
    %v539 = vld [vmem:[%s3] sm:$0xff]
    %v540 = vld [vmem:[%s4] sm:$0xff]
    %v541 = vpack.c.bf16 %v539, %v539
    %v542 = vld [vmem:[%s8] sm:$0xf]
    %v543 = vld [vmem:[%s8 + $0x4] sm:$0xf]
    %v544 = vld [vmem:[%s8 + $0x8] sm:$0xf]
    %v545 = vld [vmem:[%s8 + $0xc] sm:$0xf]
    %v550 = vunpack.c.l.b16 %v542
    %v551 = vunpack.c.l.b16 %v543
    %v552 = vunpack.c.l.b16 %v544
    %v553 = vunpack.c.l.b16 %v545
    %v554 = vpack.c.b16 %v551, %v550
    %v555 = vpack.c.b16 %v553, %v552
    %v559 = vsel %vm305, %v541, 0
    %561 = vmatprep.subr.bf16.mxu0 0
    %562 = vmatpush1.bf16.msra.mxu0 %v554
    %563 = vmatprep.subr.bf16.mxu0 0
    %564 = vmatpush1.bf16.msra.mxu0 %v555
    %565 = vmatprep.subr.bf16.mxu0 0
    %566 = vmatpush1.bf16.msra.mxu0 0
    %567 = vmatprep.subr.bf16.mxu0 0
    %568 = vmatpush1.bf16.msra.mxu0 0
    %569 = vmatprep.subr.bf16.mxu0 0
    %570 = vmatpush1.bf16.msra.mxu0 0
    %571 = vmatprep.subr.bf16.mxu0 0
    %572 = vmatpush1.bf16.msra.mxu0 0
    %573 = vmatprep.subr.bf16.mxu0 0
    %574 = vmatpush1.bf16.msra.mxu0 0
    %575 = vmatprep.subr.bf16.mxu0 0
    %576 = vmatpush1.bf16.msra.mxu0 0
    %577 = vmatprep.subr.bf16.mxu0 0
    %578 = vmatpush1.bf16.msra.mxu0 0
    %579 = vmatprep.subr.bf16.mxu0 0
    %580 = vmatpush1.bf16.msra.mxu0 0
    %581 = vmatprep.subr.bf16.mxu0 0
    %582 = vmatpush1.bf16.msra.mxu0 0
    %583 = vmatprep.subr.bf16.mxu0 0
    %584 = vmatpush1.bf16.msra.mxu0 0
    %585 = vmatprep.subr.bf16.mxu0 0
    %586 = vmatpush1.bf16.msra.mxu0 0
    %587 = vmatprep.subr.bf16.mxu0 0
    %588 = vmatpush1.bf16.msra.mxu0 0
    %589 = vmatprep.subr.bf16.mxu0 0
    %590 = vmatpush1.bf16.msra.mxu0 0
    %591 = vmatprep.subr.bf16.mxu0 0
    %592 = vmatpush1.bf16.msra.mxu0 0
    %593 = vmatprep.mubr.bf16.mxu0 0
    %594 = vmatmul.mubr.bf16.gmra.mrb[0].mxu0 %v559
    %v595 = vpop.f32.mrb[0].mxu0
    %v596 = vadd.f32 0.0, %v595
    %v597 = vpop.f32.mrb[0].mxu0
    %v598 = vpop.f32.mrb[0].mxu0
    %v599 = vpop.f32.mrb[0].mxu0
    %600 = vdwg.mxu0
    %v601 = vld [vmem:[#allocation2] sm:$0xff]
    %v602 = vmul.f32 %v256, %v596
    %v603 = vpack.c.bf16 %v602, %v602
    %v604 = vld [vmem:[#allocation8] sm:$0xf]
    %v605 = vld [vmem:[#allocation8 + $0x4] sm:$0xf]
    %v606 = vld [vmem:[#allocation8 + $0x8] sm:$0xf]
    %v607 = vld [vmem:[#allocation8 + $0xc] sm:$0xf]
    %v608 = vld [vmem:[#allocation8 + $0x10] sm:$0xf]
    %v609 = vld [vmem:[#allocation8 + $0x14] sm:$0xf]
    %v610 = vld [vmem:[#allocation8 + $0x18] sm:$0xf]
    %v611 = vld [vmem:[#allocation8 + $0x1c] sm:$0xf]
    %v612 = vld [vmem:[#allocation8 + $0x20] sm:$0xf]
    %v613 = vld [vmem:[#allocation8 + $0x24] sm:$0xf]
    %v614 = vld [vmem:[#allocation8 + $0x28] sm:$0xf]
    %v615 = vld [vmem:[#allocation8 + $0x2c] sm:$0xf]
    %v616 = vld [vmem:[#allocation8 + $0x30] sm:$0xf]
    %v617 = vld [vmem:[#allocation8 + $0x34] sm:$0xf]
    %v618 = vld [vmem:[#allocation8 + $0x38] sm:$0xf]
    %v619 = vld [vmem:[#allocation8 + $0x3c] sm:$0xf]
    %v636 = vunpack.c.l.b16 %v604
    %v637 = vunpack.c.l.b16 %v605
    %v638 = vunpack.c.l.b16 %v606
    %v639 = vunpack.c.l.b16 %v607
    %v640 = vunpack.c.l.b16 %v608
    %v641 = vunpack.c.l.b16 %v609
    %v642 = vunpack.c.l.b16 %v610
    %v643 = vunpack.c.l.b16 %v611
    %v644 = vunpack.c.l.b16 %v612
    %v645 = vunpack.c.l.b16 %v613
    %v646 = vunpack.c.l.b16 %v614
    %v647 = vunpack.c.l.b16 %v615
    %v648 = vunpack.c.l.b16 %v616
    %v649 = vunpack.c.l.b16 %v617
    %v650 = vunpack.c.l.b16 %v618
    %v651 = vunpack.c.l.b16 %v619
    %v652 = vpack.c.b16 %v637, %v636
    %v653 = vpack.c.b16 %v639, %v638
    %v654 = vpack.c.b16 %v641, %v640
    %v655 = vpack.c.b16 %v643, %v642
    %v656 = vpack.c.b16 %v645, %v644
    %v657 = vpack.c.b16 %v647, %v646
    %v658 = vpack.c.b16 %v649, %v648
    %v659 = vpack.c.b16 %v651, %v650
    %668 = vmatprep.subr.bf16.mxu0 0
    %669 = vmatpush1.bf16.msra.mxu0 %v652
    %670 = vmatprep.subr.bf16.mxu0 0
    %671 = vmatpush1.bf16.msra.mxu0 %v653
    %672 = vmatprep.subr.bf16.mxu0 0
    %673 = vmatpush1.bf16.msra.mxu0 %v654
    %674 = vmatprep.subr.bf16.mxu0 0
    %675 = vmatpush1.bf16.msra.mxu0 %v655
    %676 = vmatprep.subr.bf16.mxu0 0
    %677 = vmatpush1.bf16.msra.mxu0 %v656
    %678 = vmatprep.subr.bf16.mxu0 0
    %679 = vmatpush1.bf16.msra.mxu0 %v657
    %680 = vmatprep.subr.bf16.mxu0 0
    %681 = vmatpush1.bf16.msra.mxu0 %v658
    %682 = vmatprep.subr.bf16.mxu0 0
    %683 = vmatpush1.bf16.msra.mxu0 %v659
    %684 = vmatprep.subr.bf16.mxu0 0
    %685 = vmatpush1.bf16.msra.mxu0 0
    %686 = vmatprep.subr.bf16.mxu0 0
    %687 = vmatpush1.bf16.msra.mxu0 0
    %688 = vmatprep.subr.bf16.mxu0 0
    %689 = vmatpush1.bf16.msra.mxu0 0
    %690 = vmatprep.subr.bf16.mxu0 0
    %691 = vmatpush1.bf16.msra.mxu0 0
    %692 = vmatprep.subr.bf16.mxu0 0
    %693 = vmatpush1.bf16.msra.mxu0 0
    %694 = vmatprep.subr.bf16.mxu0 0
    %695 = vmatpush1.bf16.msra.mxu0 0
    %696 = vmatprep.subr.bf16.mxu0 0
    %697 = vmatpush1.bf16.msra.mxu0 0
    %698 = vmatprep.subr.bf16.mxu0 0
    %699 = vmatpush1.bf16.msra.mxu0 0
    %700 = vmatprep.mubr.bf16.mxu0 0
    %701 = vmatmul.mubr.bf16.gmra.mrb[0].mxu0 %v603
    %v702 = vpop.f32.mrb[0].mxu0
    %v703 = vadd.f32 0.0, %v702
    %v704 = vpop.f32.mrb[0].mxu0
    %v705 = vpop.f32.mrb[0].mxu0
    %v706 = vpop.f32.mrb[0].mxu0
    %707 = vdwg.mxu0
    %v708 = vadd.f32 %v601, %v703
    %v709 = vxor.u32 %v708, 2147483648
    %v710 = vmul.f32 %v709, 1.442695
    %v711 = vpow.pop %v710
    %v712 = vadd.f32 %v711, 1.0
    %v713 = vrcp.pop %v712
    %v714 = vmul.f32 1.0, %v713
    %v715 = vtanh.pop %v708
    %717 = vrot.lane.b32.xlu0 %v540, 32
    %v718 = vpop.permute.xlu0 %717
    %v720 = vmul.f32 %v714, %v718
    %722 = vrot.lane.b32.xlu0 %v715, 32
    %v723 = vpop.permute.xlu0 %722
    %v725 = vmul.f32 %v714, %v723
    %727 = vrot.lane.b32.xlu0 %v725, 32
    %v728 = vpop.permute.xlu0 %727
    %v730 = vadd.f32 %v720, %v728
    %v731 = vtanh.pop %v730
    %733 = vrot.lane.b32.xlu0 %v731, 32
    %v734 = vpop.permute.xlu0 %733
    %v736 = vmul.f32 %v714, %v734
    %738 = vrot.lane.b32.xlu0 %v736, 64
    %v739 = vpop.permute.xlu0 %738
    %741 = vst.msk [vmem:[%s12] sm:$0xff] %vm305, %v739
    %v742 = vpack.c.bf16 %v736, %v736
    %v743 = vld [vmem:[%s8] sm:$0xf]
    %v744 = vld [vmem:[%s8 + $0x4] sm:$0xf]
    %v745 = vld [vmem:[%s8 + $0x8] sm:$0xf]
    %v746 = vld [vmem:[%s8 + $0xc] sm:$0xf]
    %748 = vrot.lane.b32.xlu0 %v742, 64
    %v749 = vpop.permute.xlu0 %748
    %v754 = vunpack.c.l.b16 %v743
    %v755 = vunpack.c.l.b16 %v744
    %v756 = vunpack.c.l.b16 %v745
    %v757 = vunpack.c.l.b16 %v746
    %v758 = vpack.c.b16 %v755, %v754
    %v759 = vpack.c.b16 %v757, %v756
    %v763 = vsel %vm305, %v749, 0
    %765 = vmatprep.subr.bf16.mxu0 0
    %766 = vmatpush1.bf16.msra.mxu0 %v758
    %767 = vmatprep.subr.bf16.mxu0 0
    %768 = vmatpush1.bf16.msra.mxu0 %v759
    %769 = vmatprep.subr.bf16.mxu0 0
    %770 = vmatpush1.bf16.msra.mxu0 0
    %771 = vmatprep.subr.bf16.mxu0 0
    %772 = vmatpush1.bf16.msra.mxu0 0
    %773 = vmatprep.subr.bf16.mxu0 0
    %774 = vmatpush1.bf16.msra.mxu0 0
    %775 = vmatprep.subr.bf16.mxu0 0
    %776 = vmatpush1.bf16.msra.mxu0 0
    %777 = vmatprep.subr.bf16.mxu0 0
    %778 = vmatpush1.bf16.msra.mxu0 0
    %779 = vmatprep.subr.bf16.mxu0 0
    %780 = vmatpush1.bf16.msra.mxu0 0
    %781 = vmatprep.subr.bf16.mxu0 0
    %782 = vmatpush1.bf16.msra.mxu0 0
    %783 = vmatprep.subr.bf16.mxu0 0
    %784 = vmatpush1.bf16.msra.mxu0 0
    %785 = vmatprep.subr.bf16.mxu0 0
    %786 = vmatpush1.bf16.msra.mxu0 0
    %787 = vmatprep.subr.bf16.mxu0 0
    %788 = vmatpush1.bf16.msra.mxu0 0
    %789 = vmatprep.subr.bf16.mxu0 0
    %790 = vmatpush1.bf16.msra.mxu0 0
    %791 = vmatprep.subr.bf16.mxu0 0
    %792 = vmatpush1.bf16.msra.mxu0 0
    %793 = vmatprep.subr.bf16.mxu0 0
    %794 = vmatpush1.bf16.msra.mxu0 0
    %795 = vmatprep.subr.bf16.mxu0 0
    %796 = vmatpush1.bf16.msra.mxu0 0
    %797 = vmatprep.mubr.bf16.mxu0 0
    %798 = vmatmul.mubr.bf16.gmra.mrb[0].mxu0 %v763
    %v799 = vpop.f32.mrb[0].mxu0
    %v800 = vadd.f32 0.0, %v799
    %v801 = vpop.f32.mrb[0].mxu0
    %v802 = vpop.f32.mrb[0].mxu0
    %v803 = vpop.f32.mrb[0].mxu0
    %804 = vdwg.mxu0
    %s805 = scalar_lea.vmem [#allocation2], 8
    %v806 = vld [vmem:[%s805] sm:$0xff]
    %v807 = vmul.f32 %v256, %v800
    %v808 = vpack.c.bf16 %v807, %v807
    %v809 = vld [vmem:[#allocation8] sm:$0xf]
    %v810 = vld [vmem:[#allocation8 + $0x4] sm:$0xf]
    %v811 = vld [vmem:[#allocation8 + $0x8] sm:$0xf]
    %v812 = vld [vmem:[#allocation8 + $0xc] sm:$0xf]
    %v813 = vld [vmem:[#allocation8 + $0x10] sm:$0xf]
    %v814 = vld [vmem:[#allocation8 + $0x14] sm:$0xf]
    %v815 = vld [vmem:[#allocation8 + $0x18] sm:$0xf]
    %v816 = vld [vmem:[#allocation8 + $0x1c] sm:$0xf]
    %v817 = vld [vmem:[#allocation8 + $0x20] sm:$0xf]
    %v818 = vld [vmem:[#allocation8 + $0x24] sm:$0xf]
    %v819 = vld [vmem:[#allocation8 + $0x28] sm:$0xf]
    %v820 = vld [vmem:[#allocation8 + $0x2c] sm:$0xf]
    %v821 = vld [vmem:[#allocation8 + $0x30] sm:$0xf]
    %v822 = vld [vmem:[#allocation8 + $0x34] sm:$0xf]
    %v823 = vld [vmem:[#allocation8 + $0x38] sm:$0xf]
    %v824 = vld [vmem:[#allocation8 + $0x3c] sm:$0xf]
    %v841 = vunpack.c.l.b16 %v809
    %v842 = vunpack.c.l.b16 %v810
    %v843 = vunpack.c.l.b16 %v811
    %v844 = vunpack.c.l.b16 %v812
    %v845 = vunpack.c.l.b16 %v813
    %v846 = vunpack.c.l.b16 %v814
    %v847 = vunpack.c.l.b16 %v815
    %v848 = vunpack.c.l.b16 %v816
    %v849 = vunpack.c.l.b16 %v817
    %v850 = vunpack.c.l.b16 %v818
    %v851 = vunpack.c.l.b16 %v819
    %v852 = vunpack.c.l.b16 %v820
    %v853 = vunpack.c.l.b16 %v821
    %v854 = vunpack.c.l.b16 %v822
    %v855 = vunpack.c.l.b16 %v823
    %v856 = vunpack.c.l.b16 %v824
    %v857 = vpack.c.b16 %v842, %v841
    %v858 = vpack.c.b16 %v844, %v843
    %v859 = vpack.c.b16 %v846, %v845
    %v860 = vpack.c.b16 %v848, %v847
    %v861 = vpack.c.b16 %v850, %v849
    %v862 = vpack.c.b16 %v852, %v851
    %v863 = vpack.c.b16 %v854, %v853
    %v864 = vpack.c.b16 %v856, %v855
    %873 = vmatprep.subr.bf16.mxu0 0
    %874 = vmatpush1.bf16.msra.mxu0 %v857
    %875 = vmatprep.subr.bf16.mxu0 0
    %876 = vmatpush1.bf16.msra.mxu0 %v858
    %877 = vmatprep.subr.bf16.mxu0 0
    %878 = vmatpush1.bf16.msra.mxu0 %v859
    %879 = vmatprep.subr.bf16.mxu0 0
    %880 = vmatpush1.bf16.msra.mxu0 %v860
    %881 = vmatprep.subr.bf16.mxu0 0
    %882 = vmatpush1.bf16.msra.mxu0 %v861
    %883 = vmatprep.subr.bf16.mxu0 0
    %884 = vmatpush1.bf16.msra.mxu0 %v862
    %885 = vmatprep.subr.bf16.mxu0 0
    %886 = vmatpush1.bf16.msra.mxu0 %v863
    %887 = vmatprep.subr.bf16.mxu0 0
    %888 = vmatpush1.bf16.msra.mxu0 %v864
    %889 = vmatprep.subr.bf16.mxu0 0
    %890 = vmatpush1.bf16.msra.mxu0 0
    %891 = vmatprep.subr.bf16.mxu0 0
    %892 = vmatpush1.bf16.msra.mxu0 0
    %893 = vmatprep.subr.bf16.mxu0 0
    %894 = vmatpush1.bf16.msra.mxu0 0
    %895 = vmatprep.subr.bf16.mxu0 0
    %896 = vmatpush1.bf16.msra.mxu0 0
    %897 = vmatprep.subr.bf16.mxu0 0
    %898 = vmatpush1.bf16.msra.mxu0 0
    %899 = vmatprep.subr.bf16.mxu0 0
    %900 = vmatpush1.bf16.msra.mxu0 0
    %901 = vmatprep.subr.bf16.mxu0 0
    %902 = vmatpush1.bf16.msra.mxu0 0
    %903 = vmatprep.subr.bf16.mxu0 0
    %904 = vmatpush1.bf16.msra.mxu0 0
    %905 = vmatprep.mubr.bf16.mxu0 0
    %906 = vmatmul.mubr.bf16.gmra.mrb[0].mxu0 %v808
    %v907 = vpop.f32.mrb[0].mxu0
    %v908 = vadd.f32 0.0, %v907
    %v909 = vpop.f32.mrb[0].mxu0
    %v910 = vpop.f32.mrb[0].mxu0
    %v911 = vpop.f32.mrb[0].mxu0
    %912 = vdwg.mxu0
    %v913 = vadd.f32 %v806, %v908
    %v914 = vxor.u32 %v913, 2147483648
    %v915 = vmul.f32 %v914, 1.442695
    %v916 = vpow.pop %v915
    %v917 = vadd.f32 %v916, 1.0
    %v918 = vrcp.pop %v917
    %v919 = vmul.f32 1.0, %v918
    %v920 = vtanh.pop %v913
    %v921 = vmul.f32 %v919, %v730
    %923 = vrot.lane.b32.xlu0 %v920, 32
    %v924 = vpop.permute.xlu0 %923
    %v926 = vmul.f32 %v919, %v924
    %928 = vrot.lane.b32.xlu0 %v926, 32
    %v929 = vpop.permute.xlu0 %928
    %v931 = vadd.f32 %v921, %v929
    %v932 = vtanh.pop %v931
    %934 = vrot.lane.b32.xlu0 %v932, 32
    %v935 = vpop.permute.xlu0 %934
    %v937 = vmul.f32 %v919, %v935
    %939 = vrot.lane.b32.xlu0 %v937, 64
    %v940 = vpop.permute.xlu0 %939
    %s942 = scalar_lea.vmem %s12, 8
    %943 = vst.msk [vmem:[%s942] sm:$0xff] %vm305, %v940
    %v944 = vpack.c.bf16 %v937, %v937
    %v945 = vld [vmem:[%s8] sm:$0xf]
    %v946 = vld [vmem:[%s8 + $0x4] sm:$0xf]
    %v947 = vld [vmem:[%s8 + $0x8] sm:$0xf]
    %v948 = vld [vmem:[%s8 + $0xc] sm:$0xf]
    %950 = vrot.lane.b32.xlu0 %v944, 64
    %v951 = vpop.permute.xlu0 %950
    %v956 = vunpack.c.l.b16 %v945
    %v957 = vunpack.c.l.b16 %v946
    %v958 = vunpack.c.l.b16 %v947
    %v959 = vunpack.c.l.b16 %v948
    %v960 = vpack.c.b16 %v957, %v956
    %v961 = vpack.c.b16 %v959, %v958
    %v965 = vsel %vm305, %v951, 0
    %967 = vmatprep.subr.bf16.mxu0 0
    %968 = vmatpush1.bf16.msra.mxu0 %v960
    %969 = vmatprep.subr.bf16.mxu0 0
    %970 = vmatpush1.bf16.msra.mxu0 %v961
    %971 = vmatprep.subr.bf16.mxu0 0
    %972 = vmatpush1.bf16.msra.mxu0 0
    %973 = vmatprep.subr.bf16.mxu0 0
    %974 = vmatpush1.bf16.msra.mxu0 0
    %975 = vmatprep.subr.bf16.mxu0 0
    %976 = vmatpush1.bf16.msra.mxu0 0
    %977 = vmatprep.subr.bf16.mxu0 0
    %978 = vmatpush1.bf16.msra.mxu0 0
    %979 = vmatprep.subr.bf16.mxu0 0
    %980 = vmatpush1.bf16.msra.mxu0 0
    %981 = vmatprep.subr.bf16.mxu0 0
    %982 = vmatpush1.bf16.msra.mxu0 0
    %983 = vmatprep.subr.bf16.mxu0 0
    %984 = vmatpush1.bf16.msra.mxu0 0
    %985 = vmatprep.subr.bf16.mxu0 0
    %986 = vmatpush1.bf16.msra.mxu0 0
    %987 = vmatprep.subr.bf16.mxu0 0
    %988 = vmatpush1.bf16.msra.mxu0 0
    %989 = vmatprep.subr.bf16.mxu0 0
    %990 = vmatpush1.bf16.msra.mxu0 0
    %991 = vmatprep.subr.bf16.mxu0 0
    %992 = vmatpush1.bf16.msra.mxu0 0
    %993 = vmatprep.subr.bf16.mxu0 0
    %994 = vmatpush1.bf16.msra.mxu0 0
    %995 = vmatprep.subr.bf16.mxu0 0
    %996 = vmatpush1.bf16.msra.mxu0 0
    %997 = vmatprep.subr.bf16.mxu0 0
    %998 = vmatpush1.bf16.msra.mxu0 0
    %999 = vmatprep.mubr.bf16.mxu0 0
    %1000 = vmatmul.mubr.bf16.gmra.mrb[0].mxu0 %v965
    %v1001 = vpop.f32.mrb[0].mxu0
    %v1002 = vadd.f32 0.0, %v1001
    %v1003 = vpop.f32.mrb[0].mxu0
    %v1004 = vpop.f32.mrb[0].mxu0
    %v1005 = vpop.f32.mrb[0].mxu0
    %1006 = vdwg.mxu0
    %s1007 = scalar_lea.vmem [#allocation2], 16
    %v1008 = vld [vmem:[%s1007] sm:$0xff]
    %v1009 = vmul.f32 %v256, %v1002
    %v1010 = vpack.c.bf16 %v1009, %v1009
    %v1011 = vld [vmem:[#allocation8] sm:$0xf]
    %v1012 = vld [vmem:[#allocation8 + $0x4] sm:$0xf]
    %v1013 = vld [vmem:[#allocation8 + $0x8] sm:$0xf]
    %v1014 = vld [vmem:[#allocation8 + $0xc] sm:$0xf]
    %v1015 = vld [vmem:[#allocation8 + $0x10] sm:$0xf]
    %v1016 = vld [vmem:[#allocation8 + $0x14] sm:$0xf]
    %v1017 = vld [vmem:[#allocation8 + $0x18] sm:$0xf]
    %v1018 = vld [vmem:[#allocation8 + $0x1c] sm:$0xf]
    %v1019 = vld [vmem:[#allocation8 + $0x20] sm:$0xf]
    %v1020 = vld [vmem:[#allocation8 + $0x24] sm:$0xf]
    %v1021 = vld [vmem:[#allocation8 + $0x28] sm:$0xf]
    %v1022 = vld [vmem:[#allocation8 + $0x2c] sm:$0xf]
    %v1023 = vld [vmem:[#allocation8 + $0x30] sm:$0xf]
    %v1024 = vld [vmem:[#allocation8 + $0x34] sm:$0xf]
    %v1025 = vld [vmem:[#allocation8 + $0x38] sm:$0xf]
    %v1026 = vld [vmem:[#allocation8 + $0x3c] sm:$0xf]
    %v1043 = vunpack.c.l.b16 %v1011
    %v1044 = vunpack.c.l.b16 %v1012
    %v1045 = vunpack.c.l.b16 %v1013
    %v1046 = vunpack.c.l.b16 %v1014
    %v1047 = vunpack.c.l.b16 %v1015
    %v1048 = vunpack.c.l.b16 %v1016
    %v1049 = vunpack.c.l.b16 %v1017
    %v1050 = vunpack.c.l.b16 %v1018
    %v1051 = vunpack.c.l.b16 %v1019
    %v1052 = vunpack.c.l.b16 %v1020
    %v1053 = vunpack.c.l.b16 %v1021
    %v1054 = vunpack.c.l.b16 %v1022
    %v1055 = vunpack.c.l.b16 %v1023
    %v1056 = vunpack.c.l.b16 %v1024
    %v1057 = vunpack.c.l.b16 %v1025
    %v1058 = vunpack.c.l.b16 %v1026
    %v1059 = vpack.c.b16 %v1044, %v1043
    %v1060 = vpack.c.b16 %v1046, %v1045
    %v1061 = vpack.c.b16 %v1048, %v1047
    %v1062 = vpack.c.b16 %v1050, %v1049
    %v1063 = vpack.c.b16 %v1052, %v1051
    %v1064 = vpack.c.b16 %v1054, %v1053
    %v1065 = vpack.c.b16 %v1056, %v1055
    %v1066 = vpack.c.b16 %v1058, %v1057
    %1075 = vmatprep.subr.bf16.mxu0 0
    %1076 = vmatpush1.bf16.msra.mxu0 %v1059
    %1077 = vmatprep.subr.bf16.mxu0 0
    %1078 = vmatpush1.bf16.msra.mxu0 %v1060
    %1079 = vmatprep.subr.bf16.mxu0 0
    %1080 = vmatpush1.bf16.msra.mxu0 %v1061
    %1081 = vmatprep.subr.bf16.mxu0 0
    %1082 = vmatpush1.bf16.msra.mxu0 %v1062
    %1083 = vmatprep.subr.bf16.mxu0 0
    %1084 = vmatpush1.bf16.msra.mxu0 %v1063
    %1085 = vmatprep.subr.bf16.mxu0 0
    %1086 = vmatpush1.bf16.msra.mxu0 %v1064
    %1087 = vmatprep.subr.bf16.mxu0 0
    %1088 = vmatpush1.bf16.msra.mxu0 %v1065
    %1089 = vmatprep.subr.bf16.mxu0 0
    %1090 = vmatpush1.bf16.msra.mxu0 %v1066
    %1091 = vmatprep.subr.bf16.mxu0 0
    %1092 = vmatpush1.bf16.msra.mxu0 0
    %1093 = vmatprep.subr.bf16.mxu0 0
    %1094 = vmatpush1.bf16.msra.mxu0 0
    %1095 = vmatprep.subr.bf16.mxu0 0
    %1096 = vmatpush1.bf16.msra.mxu0 0
    %1097 = vmatprep.subr.bf16.mxu0 0
    %1098 = vmatpush1.bf16.msra.mxu0 0
    %1099 = vmatprep.subr.bf16.mxu0 0
    %1100 = vmatpush1.bf16.msra.mxu0 0
    %1101 = vmatprep.subr.bf16.mxu0 0
    %1102 = vmatpush1.bf16.msra.mxu0 0
    %1103 = vmatprep.subr.bf16.mxu0 0
    %1104 = vmatpush1.bf16.msra.mxu0 0
    %1105 = vmatprep.subr.bf16.mxu0 0
    %1106 = vmatpush1.bf16.msra.mxu0 0
    %1107 = vmatprep.mubr.bf16.mxu0 0
    %1108 = vmatmul.mubr.bf16.gmra.mrb[0].mxu0 %v1010
    %v1109 = vpop.f32.mrb[0].mxu0
    %v1110 = vadd.f32 0.0, %v1109
    %v1111 = vpop.f32.mrb[0].mxu0
    %v1112 = vpop.f32.mrb[0].mxu0
    %v1113 = vpop.f32.mrb[0].mxu0
    %1114 = vdwg.mxu0
    %v1115 = vadd.f32 %v1008, %v1110
    %v1116 = vxor.u32 %v1115, 2147483648
    %v1117 = vmul.f32 %v1116, 1.442695
    %v1118 = vpow.pop %v1117
    %v1119 = vadd.f32 %v1118, 1.0
    %v1120 = vrcp.pop %v1119
    %v1121 = vmul.f32 1.0, %v1120
    %v1122 = vtanh.pop %v1115
    %v1123 = vmul.f32 %v1121, %v931
    %1125 = vrot.lane.b32.xlu0 %v1122, 32
    %v1126 = vpop.permute.xlu0 %1125
    %v1128 = vmul.f32 %v1121, %v1126
    %1130 = vrot.lane.b32.xlu0 %v1128, 32
    %v1131 = vpop.permute.xlu0 %1130
    %v1133 = vadd.f32 %v1123, %v1131
    %v1134 = vtanh.pop %v1133
    %1136 = vrot.lane.b32.xlu0 %v1134, 32
    %v1137 = vpop.permute.xlu0 %1136
    %v1139 = vmul.f32 %v1121, %v1137
    %1141 = vrot.lane.b32.xlu0 %v1139, 64
    %v1142 = vpop.permute.xlu0 %1141
    %s1144 = scalar_lea.vmem %s12, 16
    %1145 = vst.msk [vmem:[%s1144] sm:$0xff] %vm305, %v1142
    %v1146 = vpack.c.bf16 %v1139, %v1139
    %v1147 = vld [vmem:[%s8] sm:$0xf]
    %v1148 = vld [vmem:[%s8 + $0x4] sm:$0xf]
    %v1149 = vld [vmem:[%s8 + $0x8] sm:$0xf]
    %v1150 = vld [vmem:[%s8 + $0xc] sm:$0xf]
    %1152 = vrot.lane.b32.xlu0 %v1146, 64
    %v1153 = vpop.permute.xlu0 %1152
    %v1158 = vunpack.c.l.b16 %v1147
    %v1159 = vunpack.c.l.b16 %v1148
    %v1160 = vunpack.c.l.b16 %v1149
    %v1161 = vunpack.c.l.b16 %v1150
    %v1162 = vpack.c.b16 %v1159, %v1158
    %v1163 = vpack.c.b16 %v1161, %v1160
    %v1167 = vsel %vm305, %v1153, 0
    %1169 = vmatprep.subr.bf16.mxu0 0
    %1170 = vmatpush1.bf16.msra.mxu0 %v1162
    %1171 = vmatprep.subr.bf16.mxu0 0
    %1172 = vmatpush1.bf16.msra.mxu0 %v1163
    %1173 = vmatprep.subr.bf16.mxu0 0
    %1174 = vmatpush1.bf16.msra.mxu0 0
    %1175 = vmatprep.subr.bf16.mxu0 0
    %1176 = vmatpush1.bf16.msra.mxu0 0
    %1177 = vmatprep.subr.bf16.mxu0 0
    %1178 = vmatpush1.bf16.msra.mxu0 0
    %1179 = vmatprep.subr.bf16.mxu0 0
    %1180 = vmatpush1.bf16.msra.mxu0 0
    %1181 = vmatprep.subr.bf16.mxu0 0
    %1182 = vmatpush1.bf16.msra.mxu0 0
    %1183 = vmatprep.subr.bf16.mxu0 0
    %1184 = vmatpush1.bf16.msra.mxu0 0
    %1185 = vmatprep.subr.bf16.mxu0 0
    %1186 = vmatpush1.bf16.msra.mxu0 0
    %1187 = vmatprep.subr.bf16.mxu0 0
    %1188 = vmatpush1.bf16.msra.mxu0 0
    %1189 = vmatprep.subr.bf16.mxu0 0
    %1190 = vmatpush1.bf16.msra.mxu0 0
    %1191 = vmatprep.subr.bf16.mxu0 0
    %1192 = vmatpush1.bf16.msra.mxu0 0
    %1193 = vmatprep.subr.bf16.mxu0 0
    %1194 = vmatpush1.bf16.msra.mxu0 0
    %1195 = vmatprep.subr.bf16.mxu0 0
    %1196 = vmatpush1.bf16.msra.mxu0 0
    %1197 = vmatprep.subr.bf16.mxu0 0
    %1198 = vmatpush1.bf16.msra.mxu0 0
    %1199 = vmatprep.subr.bf16.mxu0 0
    %1200 = vmatpush1.bf16.msra.mxu0 0
    %1201 = vmatprep.mubr.bf16.mxu0 0
    %1202 = vmatmul.mubr.bf16.gmra.mrb[0].mxu0 %v1167
    %v1203 = vpop.f32.mrb[0].mxu0
    %v1204 = vadd.f32 0.0, %v1203
    %v1205 = vpop.f32.mrb[0].mxu0
    %v1206 = vpop.f32.mrb[0].mxu0
    %v1207 = vpop.f32.mrb[0].mxu0
    %1208 = vdwg.mxu0
    %s1209 = scalar_lea.vmem [#allocation2], 24
    %v1210 = vld [vmem:[%s1209] sm:$0xff]
    %v1211 = vmul.f32 %v256, %v1204
    %v1212 = vpack.c.bf16 %v1211, %v1211
    %v1213 = vld [vmem:[#allocation8] sm:$0xf]
    %v1214 = vld [vmem:[#allocation8 + $0x4] sm:$0xf]
    %v1215 = vld [vmem:[#allocation8 + $0x8] sm:$0xf]
    %v1216 = vld [vmem:[#allocation8 + $0xc] sm:$0xf]
    %v1217 = vld [vmem:[#allocation8 + $0x10] sm:$0xf]
    %v1218 = vld [vmem:[#allocation8 + $0x14] sm:$0xf]
    %v1219 = vld [vmem:[#allocation8 + $0x18] sm:$0xf]
    %v1220 = vld [vmem:[#allocation8 + $0x1c] sm:$0xf]
    %v1221 = vld [vmem:[#allocation8 + $0x20] sm:$0xf]
    %v1222 = vld [vmem:[#allocation8 + $0x24] sm:$0xf]
    %v1223 = vld [vmem:[#allocation8 + $0x28] sm:$0xf]
    %v1224 = vld [vmem:[#allocation8 + $0x2c] sm:$0xf]
    %v1225 = vld [vmem:[#allocation8 + $0x30] sm:$0xf]
    %v1226 = vld [vmem:[#allocation8 + $0x34] sm:$0xf]
    %v1227 = vld [vmem:[#allocation8 + $0x38] sm:$0xf]
    %v1228 = vld [vmem:[#allocation8 + $0x3c] sm:$0xf]
    %v1245 = vunpack.c.l.b16 %v1213
    %v1246 = vunpack.c.l.b16 %v1214
    %v1247 = vunpack.c.l.b16 %v1215
    %v1248 = vunpack.c.l.b16 %v1216
    %v1249 = vunpack.c.l.b16 %v1217
    %v1250 = vunpack.c.l.b16 %v1218
    %v1251 = vunpack.c.l.b16 %v1219
    %v1252 = vunpack.c.l.b16 %v1220
    %v1253 = vunpack.c.l.b16 %v1221
    %v1254 = vunpack.c.l.b16 %v1222
    %v1255 = vunpack.c.l.b16 %v1223
    %v1256 = vunpack.c.l.b16 %v1224
    %v1257 = vunpack.c.l.b16 %v1225
    %v1258 = vunpack.c.l.b16 %v1226
    %v1259 = vunpack.c.l.b16 %v1227
    %v1260 = vunpack.c.l.b16 %v1228
    %v1261 = vpack.c.b16 %v1246, %v1245
    %v1262 = vpack.c.b16 %v1248, %v1247
    %v1263 = vpack.c.b16 %v1250, %v1249
    %v1264 = vpack.c.b16 %v1252, %v1251
    %v1265 = vpack.c.b16 %v1254, %v1253
    %v1266 = vpack.c.b16 %v1256, %v1255
    %v1267 = vpack.c.b16 %v1258, %v1257
    %v1268 = vpack.c.b16 %v1260, %v1259
    %1277 = vmatprep.subr.bf16.mxu0 0
    %1278 = vmatpush1.bf16.msra.mxu0 %v1261
    %1279 = vmatprep.subr.bf16.mxu0 0
    %1280 = vmatpush1.bf16.msra.mxu0 %v1262
    %1281 = vmatprep.subr.bf16.mxu0 0
    %1282 = vmatpush1.bf16.msra.mxu0 %v1263
    %1283 = vmatprep.subr.bf16.mxu0 0
    %1284 = vmatpush1.bf16.msra.mxu0 %v1264
    %1285 = vmatprep.subr.bf16.mxu0 0
    %1286 = vmatpush1.bf16.msra.mxu0 %v1265
    %1287 = vmatprep.subr.bf16.mxu0 0
    %1288 = vmatpush1.bf16.msra.mxu0 %v1266
    %1289 = vmatprep.subr.bf16.mxu0 0
    %1290 = vmatpush1.bf16.msra.mxu0 %v1267
    %1291 = vmatprep.subr.bf16.mxu0 0
    %1292 = vmatpush1.bf16.msra.mxu0 %v1268
    %1293 = vmatprep.subr.bf16.mxu0 0
    %1294 = vmatpush1.bf16.msra.mxu0 0
    %1295 = vmatprep.subr.bf16.mxu0 0
    %1296 = vmatpush1.bf16.msra.mxu0 0
    %1297 = vmatprep.subr.bf16.mxu0 0
    %1298 = vmatpush1.bf16.msra.mxu0 0
    %1299 = vmatprep.subr.bf16.mxu0 0
    %1300 = vmatpush1.bf16.msra.mxu0 0
    %1301 = vmatprep.subr.bf16.mxu0 0
    %1302 = vmatpush1.bf16.msra.mxu0 0
    %1303 = vmatprep.subr.bf16.mxu0 0
    %1304 = vmatpush1.bf16.msra.mxu0 0
    %1305 = vmatprep.subr.bf16.mxu0 0
    %1306 = vmatpush1.bf16.msra.mxu0 0
    %1307 = vmatprep.subr.bf16.mxu0 0
    %1308 = vmatpush1.bf16.msra.mxu0 0
    %1309 = vmatprep.mubr.bf16.mxu0 0
    %1310 = vmatmul.mubr.bf16.gmra.mrb[0].mxu0 %v1212
    %v1311 = vpop.f32.mrb[0].mxu0
    %v1312 = vadd.f32 0.0, %v1311
    %v1313 = vpop.f32.mrb[0].mxu0
    %v1314 = vpop.f32.mrb[0].mxu0
    %v1315 = vpop.f32.mrb[0].mxu0
    %1316 = vdwg.mxu0
    %v1317 = vadd.f32 %v1210, %v1312
    %v1318 = vxor.u32 %v1317, 2147483648
    %v1319 = vmul.f32 %v1318, 1.442695
    %v1320 = vpow.pop %v1319
    %v1321 = vadd.f32 %v1320, 1.0
    %v1322 = vrcp.pop %v1321
    %v1323 = vmul.f32 1.0, %v1322
    %v1324 = vtanh.pop %v1317
    %v1325 = vmul.f32 %v1323, %v1133
    %1327 = vrot.lane.b32.xlu0 %v1324, 32
    %v1328 = vpop.permute.xlu0 %1327
    %v1330 = vmul.f32 %v1323, %v1328
    %1332 = vrot.lane.b32.xlu0 %v1330, 32
    %v1333 = vpop.permute.xlu0 %1332
    %v1335 = vadd.f32 %v1325, %v1333
    %v1336 = vtanh.pop %v1335
    %1338 = vrot.lane.b32.xlu0 %v1336, 32
    %v1339 = vpop.permute.xlu0 %1338
    %v1341 = vmul.f32 %v1323, %v1339
    %1343 = vrot.lane.b32.xlu0 %v1341, 64
    %v1344 = vpop.permute.xlu0 %1343
    %s1346 = scalar_lea.vmem %s12, 24
    %1347 = vst.msk [vmem:[%s1346] sm:$0xff] %vm305, %v1344
    %v1348 = vpack.c.bf16 %v1341, %v1341
    %v1349 = vld [vmem:[%s8] sm:$0xf]
    %v1350 = vld [vmem:[%s8 + $0x4] sm:$0xf]
    %v1351 = vld [vmem:[%s8 + $0x8] sm:$0xf]
    %v1352 = vld [vmem:[%s8 + $0xc] sm:$0xf]
    %1354 = vrot.lane.b32.xlu0 %v1348, 64
    %v1355 = vpop.permute.xlu0 %1354
    %v1360 = vunpack.c.l.b16 %v1349
    %v1361 = vunpack.c.l.b16 %v1350
    %v1362 = vunpack.c.l.b16 %v1351
    %v1363 = vunpack.c.l.b16 %v1352
    %v1364 = vpack.c.b16 %v1361, %v1360
    %v1365 = vpack.c.b16 %v1363, %v1362
    %v1369 = vsel %vm305, %v1355, 0
    %1371 = vmatprep.subr.bf16.mxu0 0
    %1372 = vmatpush1.bf16.msra.mxu0 %v1364
    %1373 = vmatprep.subr.bf16.mxu0 0
    %1374 = vmatpush1.bf16.msra.mxu0 %v1365
    %1375 = vmatprep.subr.bf16.mxu0 0
    %1376 = vmatpush1.bf16.msra.mxu0 0
    %1377 = vmatprep.subr.bf16.mxu0 0
    %1378 = vmatpush1.bf16.msra.mxu0 0
    %1379 = vmatprep.subr.bf16.mxu0 0
    %1380 = vmatpush1.bf16.msra.mxu0 0
    %1381 = vmatprep.subr.bf16.mxu0 0
    %1382 = vmatpush1.bf16.msra.mxu0 0
    %1383 = vmatprep.subr.bf16.mxu0 0
    %1384 = vmatpush1.bf16.msra.mxu0 0
    %1385 = vmatprep.subr.bf16.mxu0 0
    %1386 = vmatpush1.bf16.msra.mxu0 0
    %1387 = vmatprep.subr.bf16.mxu0 0
    %1388 = vmatpush1.bf16.msra.mxu0 0
    %1389 = vmatprep.subr.bf16.mxu0 0
    %1390 = vmatpush1.bf16.msra.mxu0 0
    %1391 = vmatprep.subr.bf16.mxu0 0
    %1392 = vmatpush1.bf16.msra.mxu0 0
    %1393 = vmatprep.subr.bf16.mxu0 0
    %1394 = vmatpush1.bf16.msra.mxu0 0
    %1395 = vmatprep.subr.bf16.mxu0 0
    %1396 = vmatpush1.bf16.msra.mxu0 0
    %1397 = vmatprep.subr.bf16.mxu0 0
    %1398 = vmatpush1.bf16.msra.mxu0 0
    %1399 = vmatprep.subr.bf16.mxu0 0
    %1400 = vmatpush1.bf16.msra.mxu0 0
    %1401 = vmatprep.subr.bf16.mxu0 0
    %1402 = vmatpush1.bf16.msra.mxu0 0
    %1403 = vmatprep.mubr.bf16.mxu0 0
    %1404 = vmatmul.mubr.bf16.gmra.mrb[0].mxu0 %v1369
    %v1405 = vpop.f32.mrb[0].mxu0
    %v1406 = vadd.f32 0.0, %v1405
    %v1407 = vpop.f32.mrb[0].mxu0
    %v1408 = vpop.f32.mrb[0].mxu0
    %v1409 = vpop.f32.mrb[0].mxu0
    %1410 = vdwg.mxu0
    %s1411 = scalar_lea.vmem [#allocation2], 32
    %v1412 = vld [vmem:[%s1411] sm:$0xff]
    %v1413 = vmul.f32 %v256, %v1406
    %v1414 = vpack.c.bf16 %v1413, %v1413
    %v1415 = vld [vmem:[#allocation8] sm:$0xf]
    %v1416 = vld [vmem:[#allocation8 + $0x4] sm:$0xf]
    %v1417 = vld [vmem:[#allocation8 + $0x8] sm:$0xf]
    %v1418 = vld [vmem:[#allocation8 + $0xc] sm:$0xf]
    %v1419 = vld [vmem:[#allocation8 + $0x10] sm:$0xf]
    %v1420 = vld [vmem:[#allocation8 + $0x14] sm:$0xf]
    %v1421 = vld [vmem:[#allocation8 + $0x18] sm:$0xf]
    %v1422 = vld [vmem:[#allocation8 + $0x1c] sm:$0xf]
    %v1423 = vld [vmem:[#allocation8 + $0x20] sm:$0xf]
    %v1424 = vld [vmem:[#allocation8 + $0x24] sm:$0xf]
    %v1425 = vld [vmem:[#allocation8 + $0x28] sm:$0xf]
    %v1426 = vld [vmem:[#allocation8 + $0x2c] sm:$0xf]
    %v1427 = vld [vmem:[#allocation8 + $0x30] sm:$0xf]
    %v1428 = vld [vmem:[#allocation8 + $0x34] sm:$0xf]
    %v1429 = vld [vmem:[#allocation8 + $0x38] sm:$0xf]
    %v1430 = vld [vmem:[#allocation8 + $0x3c] sm:$0xf]
    %v1447 = vunpack.c.l.b16 %v1415
    %v1448 = vunpack.c.l.b16 %v1416
    %v1449 = vunpack.c.l.b16 %v1417
    %v1450 = vunpack.c.l.b16 %v1418
    %v1451 = vunpack.c.l.b16 %v1419
    %v1452 = vunpack.c.l.b16 %v1420
    %v1453 = vunpack.c.l.b16 %v1421
    %v1454 = vunpack.c.l.b16 %v1422
    %v1455 = vunpack.c.l.b16 %v1423
    %v1456 = vunpack.c.l.b16 %v1424
    %v1457 = vunpack.c.l.b16 %v1425
    %v1458 = vunpack.c.l.b16 %v1426
    %v1459 = vunpack.c.l.b16 %v1427
    %v1460 = vunpack.c.l.b16 %v1428
    %v1461 = vunpack.c.l.b16 %v1429
    %v1462 = vunpack.c.l.b16 %v1430
    %v1463 = vpack.c.b16 %v1448, %v1447
    %v1464 = vpack.c.b16 %v1450, %v1449
    %v1465 = vpack.c.b16 %v1452, %v1451
    %v1466 = vpack.c.b16 %v1454, %v1453
    %v1467 = vpack.c.b16 %v1456, %v1455
    %v1468 = vpack.c.b16 %v1458, %v1457
    %v1469 = vpack.c.b16 %v1460, %v1459
    %v1470 = vpack.c.b16 %v1462, %v1461
    %1479 = vmatprep.subr.bf16.mxu0 0
    %1480 = vmatpush1.bf16.msra.mxu0 %v1463
    %1481 = vmatprep.subr.bf16.mxu0 0
    %1482 = vmatpush1.bf16.msra.mxu0 %v1464
    %1483 = vmatprep.subr.bf16.mxu0 0
    %1484 = vmatpush1.bf16.msra.mxu0 %v1465
    %1485 = vmatprep.subr.bf16.mxu0 0
    %1486 = vmatpush1.bf16.msra.mxu0 %v1466
    %1487 = vmatprep.subr.bf16.mxu0 0
    %1488 = vmatpush1.bf16.msra.mxu0 %v1467
    %1489 = vmatprep.subr.bf16.mxu0 0
    %1490 = vmatpush1.bf16.msra.mxu0 %v1468
    %1491 = vmatprep.subr.bf16.mxu0 0
    %1492 = vmatpush1.bf16.msra.mxu0 %v1469
    %1493 = vmatprep.subr.bf16.mxu0 0
    %1494 = vmatpush1.bf16.msra.mxu0 %v1470
    %1495 = vmatprep.subr.bf16.mxu0 0
    %1496 = vmatpush1.bf16.msra.mxu0 0
    %1497 = vmatprep.subr.bf16.mxu0 0
    %1498 = vmatpush1.bf16.msra.mxu0 0
    %1499 = vmatprep.subr.bf16.mxu0 0
    %1500 = vmatpush1.bf16.msra.mxu0 0
    %1501 = vmatprep.subr.bf16.mxu0 0
    %1502 = vmatpush1.bf16.msra.mxu0 0
    %1503 = vmatprep.subr.bf16.mxu0 0
    %1504 = vmatpush1.bf16.msra.mxu0 0
    %1505 = vmatprep.subr.bf16.mxu0 0
    %1506 = vmatpush1.bf16.msra.mxu0 0
    %1507 = vmatprep.subr.bf16.mxu0 0
    %1508 = vmatpush1.bf16.msra.mxu0 0
    %1509 = vmatprep.subr.bf16.mxu0 0
    %1510 = vmatpush1.bf16.msra.mxu0 0
    %1511 = vmatprep.mubr.bf16.mxu0 0
    %1512 = vmatmul.mubr.bf16.gmra.mrb[0].mxu0 %v1414
    %v1513 = vpop.f32.mrb[0].mxu0
    %v1514 = vadd.f32 0.0, %v1513
    %v1515 = vpop.f32.mrb[0].mxu0
    %v1516 = vpop.f32.mrb[0].mxu0
    %v1517 = vpop.f32.mrb[0].mxu0
    %1518 = vdwg.mxu0
    %v1519 = vadd.f32 %v1412, %v1514
    %v1520 = vxor.u32 %v1519, 2147483648
    %v1521 = vmul.f32 %v1520, 1.442695
    %v1522 = vpow.pop %v1521
    %v1523 = vadd.f32 %v1522, 1.0
    %v1524 = vrcp.pop %v1523
    %v1525 = vmul.f32 1.0, %v1524
    %v1526 = vtanh.pop %v1519
    %v1527 = vmul.f32 %v1525, %v1335
    %1529 = vrot.lane.b32.xlu0 %v1526, 32
    %v1530 = vpop.permute.xlu0 %1529
    %v1532 = vmul.f32 %v1525, %v1530
    %1534 = vrot.lane.b32.xlu0 %v1532, 32
    %v1535 = vpop.permute.xlu0 %1534
    %v1537 = vadd.f32 %v1527, %v1535
    %v1538 = vtanh.pop %v1537
    %1540 = vrot.lane.b32.xlu0 %v1538, 32
    %v1541 = vpop.permute.xlu0 %1540
    %v1543 = vmul.f32 %v1525, %v1541
    %1545 = vrot.lane.b32.xlu0 %v1543, 64
    %v1546 = vpop.permute.xlu0 %1545
    %s1548 = scalar_lea.vmem %s12, 32
    %1549 = vst.msk [vmem:[%s1548] sm:$0xff] %vm305, %v1546
    %v1550 = vpack.c.bf16 %v1543, %v1543
    %v1551 = vld [vmem:[%s8] sm:$0xf]
    %v1552 = vld [vmem:[%s8 + $0x4] sm:$0xf]
    %v1553 = vld [vmem:[%s8 + $0x8] sm:$0xf]
    %v1554 = vld [vmem:[%s8 + $0xc] sm:$0xf]
    %1556 = vrot.lane.b32.xlu0 %v1550, 64
    %v1557 = vpop.permute.xlu0 %1556
    %v1562 = vunpack.c.l.b16 %v1551
    %v1563 = vunpack.c.l.b16 %v1552
    %v1564 = vunpack.c.l.b16 %v1553
    %v1565 = vunpack.c.l.b16 %v1554
    %v1566 = vpack.c.b16 %v1563, %v1562
    %v1567 = vpack.c.b16 %v1565, %v1564
    %v1571 = vsel %vm305, %v1557, 0
    %1573 = vmatprep.subr.bf16.mxu0 0
    %1574 = vmatpush1.bf16.msra.mxu0 %v1566
    %1575 = vmatprep.subr.bf16.mxu0 0
    %1576 = vmatpush1.bf16.msra.mxu0 %v1567
    %1577 = vmatprep.subr.bf16.mxu0 0
    %1578 = vmatpush1.bf16.msra.mxu0 0
    %1579 = vmatprep.subr.bf16.mxu0 0
    %1580 = vmatpush1.bf16.msra.mxu0 0
    %1581 = vmatprep.subr.bf16.mxu0 0
    %1582 = vmatpush1.bf16.msra.mxu0 0
    %1583 = vmatprep.subr.bf16.mxu0 0
    %1584 = vmatpush1.bf16.msra.mxu0 0
    %1585 = vmatprep.subr.bf16.mxu0 0
    %1586 = vmatpush1.bf16.msra.mxu0 0
    %1587 = vmatprep.subr.bf16.mxu0 0
    %1588 = vmatpush1.bf16.msra.mxu0 0
    %1589 = vmatprep.subr.bf16.mxu0 0
    %1590 = vmatpush1.bf16.msra.mxu0 0
    %1591 = vmatprep.subr.bf16.mxu0 0
    %1592 = vmatpush1.bf16.msra.mxu0 0
    %1593 = vmatprep.subr.bf16.mxu0 0
    %1594 = vmatpush1.bf16.msra.mxu0 0
    %1595 = vmatprep.subr.bf16.mxu0 0
    %1596 = vmatpush1.bf16.msra.mxu0 0
    %1597 = vmatprep.subr.bf16.mxu0 0
    %1598 = vmatpush1.bf16.msra.mxu0 0
    %1599 = vmatprep.subr.bf16.mxu0 0
    %1600 = vmatpush1.bf16.msra.mxu0 0
    %1601 = vmatprep.subr.bf16.mxu0 0
    %1602 = vmatpush1.bf16.msra.mxu0 0
    %1603 = vmatprep.subr.bf16.mxu0 0
    %1604 = vmatpush1.bf16.msra.mxu0 0
    %1605 = vmatprep.mubr.bf16.mxu0 0
    %1606 = vmatmul.mubr.bf16.gmra.mrb[0].mxu0 %v1571
    %v1607 = vpop.f32.mrb[0].mxu0
    %v1608 = vadd.f32 0.0, %v1607
    %v1609 = vpop.f32.mrb[0].mxu0
    %v1610 = vpop.f32.mrb[0].mxu0
    %v1611 = vpop.f32.mrb[0].mxu0
    %1612 = vdwg.mxu0
    %s1613 = scalar_lea.vmem [#allocation2], 40
    %v1614 = vld [vmem:[%s1613] sm:$0xff]
    %v1615 = vmul.f32 %v256, %v1608
    %v1616 = vpack.c.bf16 %v1615, %v1615
    %v1617 = vld [vmem:[#allocation8] sm:$0xf]
    %v1618 = vld [vmem:[#allocation8 + $0x4] sm:$0xf]
    %v1619 = vld [vmem:[#allocation8 + $0x8] sm:$0xf]
    %v1620 = vld [vmem:[#allocation8 + $0xc] sm:$0xf]
    %v1621 = vld [vmem:[#allocation8 + $0x10] sm:$0xf]
    %v1622 = vld [vmem:[#allocation8 + $0x14] sm:$0xf]
    %v1623 = vld [vmem:[#allocation8 + $0x18] sm:$0xf]
    %v1624 = vld [vmem:[#allocation8 + $0x1c] sm:$0xf]
    %v1625 = vld [vmem:[#allocation8 + $0x20] sm:$0xf]
    %v1626 = vld [vmem:[#allocation8 + $0x24] sm:$0xf]
    %v1627 = vld [vmem:[#allocation8 + $0x28] sm:$0xf]
    %v1628 = vld [vmem:[#allocation8 + $0x2c] sm:$0xf]
    %v1629 = vld [vmem:[#allocation8 + $0x30] sm:$0xf]
    %v1630 = vld [vmem:[#allocation8 + $0x34] sm:$0xf]
    %v1631 = vld [vmem:[#allocation8 + $0x38] sm:$0xf]
    %v1632 = vld [vmem:[#allocation8 + $0x3c] sm:$0xf]
    %v1649 = vunpack.c.l.b16 %v1617
    %v1650 = vunpack.c.l.b16 %v1618
    %v1651 = vunpack.c.l.b16 %v1619
    %v1652 = vunpack.c.l.b16 %v1620
    %v1653 = vunpack.c.l.b16 %v1621
    %v1654 = vunpack.c.l.b16 %v1622
    %v1655 = vunpack.c.l.b16 %v1623
    %v1656 = vunpack.c.l.b16 %v1624
    %v1657 = vunpack.c.l.b16 %v1625
    %v1658 = vunpack.c.l.b16 %v1626
    %v1659 = vunpack.c.l.b16 %v1627
    %v1660 = vunpack.c.l.b16 %v1628
    %v1661 = vunpack.c.l.b16 %v1629
    %v1662 = vunpack.c.l.b16 %v1630
    %v1663 = vunpack.c.l.b16 %v1631
    %v1664 = vunpack.c.l.b16 %v1632
    %v1665 = vpack.c.b16 %v1650, %v1649
    %v1666 = vpack.c.b16 %v1652, %v1651
    %v1667 = vpack.c.b16 %v1654, %v1653
    %v1668 = vpack.c.b16 %v1656, %v1655
    %v1669 = vpack.c.b16 %v1658, %v1657
    %v1670 = vpack.c.b16 %v1660, %v1659
    %v1671 = vpack.c.b16 %v1662, %v1661
    %v1672 = vpack.c.b16 %v1664, %v1663
    %1681 = vmatprep.subr.bf16.mxu0 0
    %1682 = vmatpush1.bf16.msra.mxu0 %v1665
    %1683 = vmatprep.subr.bf16.mxu0 0
    %1684 = vmatpush1.bf16.msra.mxu0 %v1666
    %1685 = vmatprep.subr.bf16.mxu0 0
    %1686 = vmatpush1.bf16.msra.mxu0 %v1667
    %1687 = vmatprep.subr.bf16.mxu0 0
    %1688 = vmatpush1.bf16.msra.mxu0 %v1668
    %1689 = vmatprep.subr.bf16.mxu0 0
    %1690 = vmatpush1.bf16.msra.mxu0 %v1669
    %1691 = vmatprep.subr.bf16.mxu0 0
    %1692 = vmatpush1.bf16.msra.mxu0 %v1670
    %1693 = vmatprep.subr.bf16.mxu0 0
    %1694 = vmatpush1.bf16.msra.mxu0 %v1671
    %1695 = vmatprep.subr.bf16.mxu0 0
    %1696 = vmatpush1.bf16.msra.mxu0 %v1672
    %1697 = vmatprep.subr.bf16.mxu0 0
    %1698 = vmatpush1.bf16.msra.mxu0 0
    %1699 = vmatprep.subr.bf16.mxu0 0
    %1700 = vmatpush1.bf16.msra.mxu0 0
    %1701 = vmatprep.subr.bf16.mxu0 0
    %1702 = vmatpush1.bf16.msra.mxu0 0
    %1703 = vmatprep.subr.bf16.mxu0 0
    %1704 = vmatpush1.bf16.msra.mxu0 0
    %1705 = vmatprep.subr.bf16.mxu0 0
    %1706 = vmatpush1.bf16.msra.mxu0 0
    %1707 = vmatprep.subr.bf16.mxu0 0
    %1708 = vmatpush1.bf16.msra.mxu0 0
    %1709 = vmatprep.subr.bf16.mxu0 0
    %1710 = vmatpush1.bf16.msra.mxu0 0
    %1711 = vmatprep.subr.bf16.mxu0 0
    %1712 = vmatpush1.bf16.msra.mxu0 0
    %1713 = vmatprep.mubr.bf16.mxu0 0
    %1714 = vmatmul.mubr.bf16.gmra.mrb[0].mxu0 %v1616
    %v1715 = vpop.f32.mrb[0].mxu0
    %v1716 = vadd.f32 0.0, %v1715
    %v1717 = vpop.f32.mrb[0].mxu0
    %v1718 = vpop.f32.mrb[0].mxu0
    %v1719 = vpop.f32.mrb[0].mxu0
    %1720 = vdwg.mxu0
    %v1721 = vadd.f32 %v1614, %v1716
    %v1722 = vxor.u32 %v1721, 2147483648
    %v1723 = vmul.f32 %v1722, 1.442695
    %v1724 = vpow.pop %v1723
    %v1725 = vadd.f32 %v1724, 1.0
    %v1726 = vrcp.pop %v1725
    %v1727 = vmul.f32 1.0, %v1726
    %v1728 = vtanh.pop %v1721
    %v1729 = vmul.f32 %v1727, %v1537
    %1731 = vrot.lane.b32.xlu0 %v1728, 32
    %v1732 = vpop.permute.xlu0 %1731
    %v1734 = vmul.f32 %v1727, %v1732
    %1736 = vrot.lane.b32.xlu0 %v1734, 32
    %v1737 = vpop.permute.xlu0 %1736
    %v1739 = vadd.f32 %v1729, %v1737
    %v1740 = vtanh.pop %v1739
    %1742 = vrot.lane.b32.xlu0 %v1740, 32
    %v1743 = vpop.permute.xlu0 %1742
    %v1745 = vmul.f32 %v1727, %v1743
    %1747 = vrot.lane.b32.xlu0 %v1745, 64
    %v1748 = vpop.permute.xlu0 %1747
    %s1750 = scalar_lea.vmem %s12, 40
    %1751 = vst.msk [vmem:[%s1750] sm:$0xff] %vm305, %v1748
    %v1752 = vpack.c.bf16 %v1745, %v1745
    %v1753 = vld [vmem:[%s8] sm:$0xf]
    %v1754 = vld [vmem:[%s8 + $0x4] sm:$0xf]
    %v1755 = vld [vmem:[%s8 + $0x8] sm:$0xf]
    %v1756 = vld [vmem:[%s8 + $0xc] sm:$0xf]
    %1758 = vrot.lane.b32.xlu0 %v1752, 64
    %v1759 = vpop.permute.xlu0 %1758
    %v1764 = vunpack.c.l.b16 %v1753
    %v1765 = vunpack.c.l.b16 %v1754
    %v1766 = vunpack.c.l.b16 %v1755
    %v1767 = vunpack.c.l.b16 %v1756
    %v1768 = vpack.c.b16 %v1765, %v1764
    %v1769 = vpack.c.b16 %v1767, %v1766
    %v1773 = vsel %vm305, %v1759, 0
    %1775 = vmatprep.subr.bf16.mxu0 0
    %1776 = vmatpush1.bf16.msra.mxu0 %v1768
    %1777 = vmatprep.subr.bf16.mxu0 0
    %1778 = vmatpush1.bf16.msra.mxu0 %v1769
    %1779 = vmatprep.subr.bf16.mxu0 0
    %1780 = vmatpush1.bf16.msra.mxu0 0
    %1781 = vmatprep.subr.bf16.mxu0 0
    %1782 = vmatpush1.bf16.msra.mxu0 0
    %1783 = vmatprep.subr.bf16.mxu0 0
    %1784 = vmatpush1.bf16.msra.mxu0 0
    %1785 = vmatprep.subr.bf16.mxu0 0
    %1786 = vmatpush1.bf16.msra.mxu0 0
    %1787 = vmatprep.subr.bf16.mxu0 0
    %1788 = vmatpush1.bf16.msra.mxu0 0
    %1789 = vmatprep.subr.bf16.mxu0 0
    %1790 = vmatpush1.bf16.msra.mxu0 0
    %1791 = vmatprep.subr.bf16.mxu0 0
    %1792 = vmatpush1.bf16.msra.mxu0 0
    %1793 = vmatprep.subr.bf16.mxu0 0
    %1794 = vmatpush1.bf16.msra.mxu0 0
    %1795 = vmatprep.subr.bf16.mxu0 0
    %1796 = vmatpush1.bf16.msra.mxu0 0
    %1797 = vmatprep.subr.bf16.mxu0 0
    %1798 = vmatpush1.bf16.msra.mxu0 0
    %1799 = vmatprep.subr.bf16.mxu0 0
    %1800 = vmatpush1.bf16.msra.mxu0 0
    %1801 = vmatprep.subr.bf16.mxu0 0
    %1802 = vmatpush1.bf16.msra.mxu0 0
    %1803 = vmatprep.subr.bf16.mxu0 0
    %1804 = vmatpush1.bf16.msra.mxu0 0
    %1805 = vmatprep.subr.bf16.mxu0 0
    %1806 = vmatpush1.bf16.msra.mxu0 0
    %1807 = vmatprep.mubr.bf16.mxu0 0
    %1808 = vmatmul.mubr.bf16.gmra.mrb[0].mxu0 %v1773
    %v1809 = vpop.f32.mrb[0].mxu0
    %v1810 = vadd.f32 0.0, %v1809
    %v1811 = vpop.f32.mrb[0].mxu0
    %v1812 = vpop.f32.mrb[0].mxu0
    %v1813 = vpop.f32.mrb[0].mxu0
    %1814 = vdwg.mxu0
    %s1815 = scalar_lea.vmem [#allocation2], 48
    %v1816 = vld [vmem:[%s1815] sm:$0xff]
    %v1817 = vmul.f32 %v256, %v1810
    %v1818 = vpack.c.bf16 %v1817, %v1817
    %v1819 = vld [vmem:[#allocation8] sm:$0xf]
    %v1820 = vld [vmem:[#allocation8 + $0x4] sm:$0xf]
    %v1821 = vld [vmem:[#allocation8 + $0x8] sm:$0xf]
    %v1822 = vld [vmem:[#allocation8 + $0xc] sm:$0xf]
    %v1823 = vld [vmem:[#allocation8 + $0x10] sm:$0xf]
    %v1824 = vld [vmem:[#allocation8 + $0x14] sm:$0xf]
    %v1825 = vld [vmem:[#allocation8 + $0x18] sm:$0xf]
    %v1826 = vld [vmem:[#allocation8 + $0x1c] sm:$0xf]
    %v1827 = vld [vmem:[#allocation8 + $0x20] sm:$0xf]
    %v1828 = vld [vmem:[#allocation8 + $0x24] sm:$0xf]
    %v1829 = vld [vmem:[#allocation8 + $0x28] sm:$0xf]
    %v1830 = vld [vmem:[#allocation8 + $0x2c] sm:$0xf]
    %v1831 = vld [vmem:[#allocation8 + $0x30] sm:$0xf]
    %v1832 = vld [vmem:[#allocation8 + $0x34] sm:$0xf]
    %v1833 = vld [vmem:[#allocation8 + $0x38] sm:$0xf]
    %v1834 = vld [vmem:[#allocation8 + $0x3c] sm:$0xf]
    %v1851 = vunpack.c.l.b16 %v1819
    %v1852 = vunpack.c.l.b16 %v1820
    %v1853 = vunpack.c.l.b16 %v1821
    %v1854 = vunpack.c.l.b16 %v1822
    %v1855 = vunpack.c.l.b16 %v1823
    %v1856 = vunpack.c.l.b16 %v1824
    %v1857 = vunpack.c.l.b16 %v1825
    %v1858 = vunpack.c.l.b16 %v1826
    %v1859 = vunpack.c.l.b16 %v1827
    %v1860 = vunpack.c.l.b16 %v1828
    %v1861 = vunpack.c.l.b16 %v1829
    %v1862 = vunpack.c.l.b16 %v1830
    %v1863 = vunpack.c.l.b16 %v1831
    %v1864 = vunpack.c.l.b16 %v1832
    %v1865 = vunpack.c.l.b16 %v1833
    %v1866 = vunpack.c.l.b16 %v1834
    %v1867 = vpack.c.b16 %v1852, %v1851
    %v1868 = vpack.c.b16 %v1854, %v1853
    %v1869 = vpack.c.b16 %v1856, %v1855
    %v1870 = vpack.c.b16 %v1858, %v1857
    %v1871 = vpack.c.b16 %v1860, %v1859
    %v1872 = vpack.c.b16 %v1862, %v1861
    %v1873 = vpack.c.b16 %v1864, %v1863
    %v1874 = vpack.c.b16 %v1866, %v1865
    %1883 = vmatprep.subr.bf16.mxu0 0
    %1884 = vmatpush1.bf16.msra.mxu0 %v1867
    %1885 = vmatprep.subr.bf16.mxu0 0
    %1886 = vmatpush1.bf16.msra.mxu0 %v1868
    %1887 = vmatprep.subr.bf16.mxu0 0
    %1888 = vmatpush1.bf16.msra.mxu0 %v1869
    %1889 = vmatprep.subr.bf16.mxu0 0
    %1890 = vmatpush1.bf16.msra.mxu0 %v1870
    %1891 = vmatprep.subr.bf16.mxu0 0
    %1892 = vmatpush1.bf16.msra.mxu0 %v1871
    %1893 = vmatprep.subr.bf16.mxu0 0
    %1894 = vmatpush1.bf16.msra.mxu0 %v1872
    %1895 = vmatprep.subr.bf16.mxu0 0
    %1896 = vmatpush1.bf16.msra.mxu0 %v1873
    %1897 = vmatprep.subr.bf16.mxu0 0
    %1898 = vmatpush1.bf16.msra.mxu0 %v1874
    %1899 = vmatprep.subr.bf16.mxu0 0
    %1900 = vmatpush1.bf16.msra.mxu0 0
    %1901 = vmatprep.subr.bf16.mxu0 0
    %1902 = vmatpush1.bf16.msra.mxu0 0
    %1903 = vmatprep.subr.bf16.mxu0 0
    %1904 = vmatpush1.bf16.msra.mxu0 0
    %1905 = vmatprep.subr.bf16.mxu0 0
    %1906 = vmatpush1.bf16.msra.mxu0 0
    %1907 = vmatprep.subr.bf16.mxu0 0
    %1908 = vmatpush1.bf16.msra.mxu0 0
    %1909 = vmatprep.subr.bf16.mxu0 0
    %1910 = vmatpush1.bf16.msra.mxu0 0
    %1911 = vmatprep.subr.bf16.mxu0 0
    %1912 = vmatpush1.bf16.msra.mxu0 0
    %1913 = vmatprep.subr.bf16.mxu0 0
    %1914 = vmatpush1.bf16.msra.mxu0 0
    %1915 = vmatprep.mubr.bf16.mxu0 0
    %1916 = vmatmul.mubr.bf16.gmra.mrb[0].mxu0 %v1818
    %v1917 = vpop.f32.mrb[0].mxu0
    %v1918 = vadd.f32 0.0, %v1917
    %v1919 = vpop.f32.mrb[0].mxu0
    %v1920 = vpop.f32.mrb[0].mxu0
    %v1921 = vpop.f32.mrb[0].mxu0
    %1922 = vdwg.mxu0
    %v1923 = vadd.f32 %v1816, %v1918
    %v1924 = vxor.u32 %v1923, 2147483648
    %v1925 = vmul.f32 %v1924, 1.442695
    %v1926 = vpow.pop %v1925
    %v1927 = vadd.f32 %v1926, 1.0
    %v1928 = vrcp.pop %v1927
    %v1929 = vmul.f32 1.0, %v1928
    %v1930 = vtanh.pop %v1923
    %v1931 = vmul.f32 %v1929, %v1739
    %1933 = vrot.lane.b32.xlu0 %v1930, 32
    %v1934 = vpop.permute.xlu0 %1933
    %v1936 = vmul.f32 %v1929, %v1934
    %1938 = vrot.lane.b32.xlu0 %v1936, 32
    %v1939 = vpop.permute.xlu0 %1938
    %v1941 = vadd.f32 %v1931, %v1939
    %v1942 = vtanh.pop %v1941
    %1944 = vrot.lane.b32.xlu0 %v1942, 32
    %v1945 = vpop.permute.xlu0 %1944
    %v1947 = vmul.f32 %v1929, %v1945
    %1949 = vrot.lane.b32.xlu0 %v1947, 64
    %v1950 = vpop.permute.xlu0 %1949
    %s1952 = scalar_lea.vmem %s12, 48
    %1953 = vst.msk [vmem:[%s1952] sm:$0xff] %vm305, %v1950
    %v1954 = vpack.c.bf16 %v1947, %v1947
    %v1955 = vld [vmem:[%s8] sm:$0xf]
    %v1956 = vld [vmem:[%s8 + $0x4] sm:$0xf]
    %v1957 = vld [vmem:[%s8 + $0x8] sm:$0xf]
    %v1958 = vld [vmem:[%s8 + $0xc] sm:$0xf]
    %1960 = vrot.lane.b32.xlu0 %v1954, 64
    %v1961 = vpop.permute.xlu0 %1960
    %v1966 = vunpack.c.l.b16 %v1955
    %v1967 = vunpack.c.l.b16 %v1956
    %v1968 = vunpack.c.l.b16 %v1957
    %v1969 = vunpack.c.l.b16 %v1958
    %v1970 = vpack.c.b16 %v1967, %v1966
    %v1971 = vpack.c.b16 %v1969, %v1968
    %v1975 = vsel %vm305, %v1961, 0
    %1977 = vmatprep.subr.bf16.mxu0 0
    %1978 = vmatpush1.bf16.msra.mxu0 %v1970
    %1979 = vmatprep.subr.bf16.mxu0 0
    %1980 = vmatpush1.bf16.msra.mxu0 %v1971
    %1981 = vmatprep.subr.bf16.mxu0 0
    %1982 = vmatpush1.bf16.msra.mxu0 0
    %1983 = vmatprep.subr.bf16.mxu0 0
    %1984 = vmatpush1.bf16.msra.mxu0 0
    %1985 = vmatprep.subr.bf16.mxu0 0
    %1986 = vmatpush1.bf16.msra.mxu0 0
    %1987 = vmatprep.subr.bf16.mxu0 0
    %1988 = vmatpush1.bf16.msra.mxu0 0
    %1989 = vmatprep.subr.bf16.mxu0 0
    %1990 = vmatpush1.bf16.msra.mxu0 0
    %1991 = vmatprep.subr.bf16.mxu0 0
    %1992 = vmatpush1.bf16.msra.mxu0 0
    %1993 = vmatprep.subr.bf16.mxu0 0
    %1994 = vmatpush1.bf16.msra.mxu0 0
    %1995 = vmatprep.subr.bf16.mxu0 0
    %1996 = vmatpush1.bf16.msra.mxu0 0
    %1997 = vmatprep.subr.bf16.mxu0 0
    %1998 = vmatpush1.bf16.msra.mxu0 0
    %1999 = vmatprep.subr.bf16.mxu0 0
    %2000 = vmatpush1.bf16.msra.mxu0 0
    %2001 = vmatprep.subr.bf16.mxu0 0
    %2002 = vmatpush1.bf16.msra.mxu0 0
    %2003 = vmatprep.subr.bf16.mxu0 0
    %2004 = vmatpush1.bf16.msra.mxu0 0
    %2005 = vmatprep.subr.bf16.mxu0 0
    %2006 = vmatpush1.bf16.msra.mxu0 0
    %2007 = vmatprep.subr.bf16.mxu0 0
    %2008 = vmatpush1.bf16.msra.mxu0 0
    %2009 = vmatprep.mubr.bf16.mxu0 0
    %2010 = vmatmul.mubr.bf16.gmra.mrb[0].mxu0 %v1975
    %v2011 = vpop.f32.mrb[0].mxu0
    %v2012 = vadd.f32 0.0, %v2011
    %v2013 = vpop.f32.mrb[0].mxu0
    %v2014 = vpop.f32.mrb[0].mxu0
    %v2015 = vpop.f32.mrb[0].mxu0
    %2016 = vdwg.mxu0
    %s2017 = scalar_lea.vmem [#allocation2], 56
    %v2018 = vld [vmem:[%s2017] sm:$0xff]
    %v2019 = vmul.f32 %v256, %v2012
    %v2020 = vpack.c.bf16 %v2019, %v2019
    %v2021 = vld [vmem:[#allocation8] sm:$0xf]
    %v2022 = vld [vmem:[#allocation8 + $0x4] sm:$0xf]
    %v2023 = vld [vmem:[#allocation8 + $0x8] sm:$0xf]
    %v2024 = vld [vmem:[#allocation8 + $0xc] sm:$0xf]
    %v2025 = vld [vmem:[#allocation8 + $0x10] sm:$0xf]
    %v2026 = vld [vmem:[#allocation8 + $0x14] sm:$0xf]
    %v2027 = vld [vmem:[#allocation8 + $0x18] sm:$0xf]
    %v2028 = vld [vmem:[#allocation8 + $0x1c] sm:$0xf]
    %v2029 = vld [vmem:[#allocation8 + $0x20] sm:$0xf]
    %v2030 = vld [vmem:[#allocation8 + $0x24] sm:$0xf]
    %v2031 = vld [vmem:[#allocation8 + $0x28] sm:$0xf]
    %v2032 = vld [vmem:[#allocation8 + $0x2c] sm:$0xf]
    %v2033 = vld [vmem:[#allocation8 + $0x30] sm:$0xf]
    %v2034 = vld [vmem:[#allocation8 + $0x34] sm:$0xf]
    %v2035 = vld [vmem:[#allocation8 + $0x38] sm:$0xf]
    %v2036 = vld [vmem:[#allocation8 + $0x3c] sm:$0xf]
    %v2053 = vunpack.c.l.b16 %v2021
    %v2054 = vunpack.c.l.b16 %v2022
    %v2055 = vunpack.c.l.b16 %v2023
    %v2056 = vunpack.c.l.b16 %v2024
    %v2057 = vunpack.c.l.b16 %v2025
    %v2058 = vunpack.c.l.b16 %v2026
    %v2059 = vunpack.c.l.b16 %v2027
    %v2060 = vunpack.c.l.b16 %v2028
    %v2061 = vunpack.c.l.b16 %v2029
    %v2062 = vunpack.c.l.b16 %v2030
    %v2063 = vunpack.c.l.b16 %v2031
    %v2064 = vunpack.c.l.b16 %v2032
    %v2065 = vunpack.c.l.b16 %v2033
    %v2066 = vunpack.c.l.b16 %v2034
    %v2067 = vunpack.c.l.b16 %v2035
    %v2068 = vunpack.c.l.b16 %v2036
    %v2069 = vpack.c.b16 %v2054, %v2053
    %v2070 = vpack.c.b16 %v2056, %v2055
    %v2071 = vpack.c.b16 %v2058, %v2057
    %v2072 = vpack.c.b16 %v2060, %v2059
    %v2073 = vpack.c.b16 %v2062, %v2061
    %v2074 = vpack.c.b16 %v2064, %v2063
    %v2075 = vpack.c.b16 %v2066, %v2065
    %v2076 = vpack.c.b16 %v2068, %v2067
    %2085 = vmatprep.subr.bf16.mxu0 0
    %2086 = vmatpush1.bf16.msra.mxu0 %v2069
    %2087 = vmatprep.subr.bf16.mxu0 0
    %2088 = vmatpush1.bf16.msra.mxu0 %v2070
    %2089 = vmatprep.subr.bf16.mxu0 0
    %2090 = vmatpush1.bf16.msra.mxu0 %v2071
    %2091 = vmatprep.subr.bf16.mxu0 0
    %2092 = vmatpush1.bf16.msra.mxu0 %v2072
    %2093 = vmatprep.subr.bf16.mxu0 0
    %2094 = vmatpush1.bf16.msra.mxu0 %v2073
    %2095 = vmatprep.subr.bf16.mxu0 0
    %2096 = vmatpush1.bf16.msra.mxu0 %v2074
    %2097 = vmatprep.subr.bf16.mxu0 0
    %2098 = vmatpush1.bf16.msra.mxu0 %v2075
    %2099 = vmatprep.subr.bf16.mxu0 0
    %2100 = vmatpush1.bf16.msra.mxu0 %v2076
    %2101 = vmatprep.subr.bf16.mxu0 0
    %2102 = vmatpush1.bf16.msra.mxu0 0
    %2103 = vmatprep.subr.bf16.mxu0 0
    %2104 = vmatpush1.bf16.msra.mxu0 0
    %2105 = vmatprep.subr.bf16.mxu0 0
    %2106 = vmatpush1.bf16.msra.mxu0 0
    %2107 = vmatprep.subr.bf16.mxu0 0
    %2108 = vmatpush1.bf16.msra.mxu0 0
    %2109 = vmatprep.subr.bf16.mxu0 0
    %2110 = vmatpush1.bf16.msra.mxu0 0
    %2111 = vmatprep.subr.bf16.mxu0 0
    %2112 = vmatpush1.bf16.msra.mxu0 0
    %2113 = vmatprep.subr.bf16.mxu0 0
    %2114 = vmatpush1.bf16.msra.mxu0 0
    %2115 = vmatprep.subr.bf16.mxu0 0
    %2116 = vmatpush1.bf16.msra.mxu0 0
    %2117 = vmatprep.mubr.bf16.mxu0 0
    %2118 = vmatmul.mubr.bf16.gmra.mrb[0].mxu0 %v2020
    %v2119 = vpop.f32.mrb[0].mxu0
    %v2120 = vadd.f32 0.0, %v2119
    %v2121 = vpop.f32.mrb[0].mxu0
    %v2122 = vpop.f32.mrb[0].mxu0
    %v2123 = vpop.f32.mrb[0].mxu0
    %2124 = vdwg.mxu0
    %v2125 = vadd.f32 %v2018, %v2120
    %v2126 = vxor.u32 %v2125, 2147483648
    %v2127 = vmul.f32 %v2126, 1.442695
    %v2128 = vpow.pop %v2127
    %v2129 = vadd.f32 %v2128, 1.0
    %v2130 = vrcp.pop %v2129
    %v2131 = vmul.f32 1.0, %v2130
    %v2132 = vtanh.pop %v2125
    %v2133 = vmul.f32 %v2131, %v1941
    %2135 = vrot.lane.b32.xlu0 %v2132, 32
    %v2136 = vpop.permute.xlu0 %2135
    %v2138 = vmul.f32 %v2131, %v2136
    %2140 = vrot.lane.b32.xlu0 %v2138, 32
    %v2141 = vpop.permute.xlu0 %2140
    %v2143 = vadd.f32 %v2133, %v2141
    %v2144 = vtanh.pop %v2143
    %2146 = vrot.lane.b32.xlu0 %v2144, 32
    %v2147 = vpop.permute.xlu0 %2146
    %v2149 = vmul.f32 %v2131, %v2147
    %2151 = vrot.lane.b32.xlu0 %v2149, 64
    %v2152 = vpop.permute.xlu0 %2151
    %s2154 = scalar_lea.vmem %s12, 56
    %2155 = vst.msk [vmem:[%s2154] sm:$0xff] %vm305, %v2152
    // Predicated region
    $region66: #{tpu_custom_call.1} parent=1 // pred_check
      _
    $region67: #{tpu_custom_call.1} parent=1 // pred_check_branch
      %2157 = sbr.rel (0) target = $region69
    $region68: #{tpu_custom_call.1} parent=1 // pred_region
      _
    $region69: #{tpu_custom_call.1} parent=1 // pred_fallthru
      _
    // Predicated region
    $region70: #{tpu_custom_call.1} parent=1 // pred_check
      _
    $region71: #{tpu_custom_call.1} parent=1 // pred_check_branch
      %2159 = sbr.rel (0) target = $region73
    $region72: #{tpu_custom_call.1} parent=1 // pred_region
      _
    $region73: #{tpu_custom_call.1} parent=1 // pred_fallthru
      _
    %2160 = vsyncpa [#allocation4], 1
    %2161 = vsyncpa [#allocation6], 1
    %2162 = vsyncpa [#allocation9], 1

</llo_original>
